<compile_context>
chip_gen: v7x
topology: tpu7x:2x2x1
jax: 0.10.0
libtpu: 0.0.40
codegen_flags: <defaults>
</compile_context>

<pallas_src>
import jax
import jax.numpy as jnp
from jax.experimental import pallas as pl
from jax.experimental.pallas import tpu as pltpu

IMAGENET_MEAN = jnp.array([0.485, 0.456, 0.406], jnp.float32)
IMAGENET_STD = jnp.array([0.229, 0.224, 0.225], jnp.float32)

# VGG19 feature config up to conv5_2 (everything needed for relu3_2/relu4_2/relu5_2).
VGG_CFG = [
    ("conv1_1", 3, 64), ("conv1_2", 64, 64), ("pool", 0, 0),
    ("conv2_1", 64, 128), ("conv2_2", 128, 128), ("pool", 0, 0),
    ("conv3_1", 128, 256), ("conv3_2", 256, 256), ("conv3_3", 256, 256),
    ("conv3_4", 256, 256), ("pool", 0, 0),
    ("conv4_1", 256, 512), ("conv4_2", 512, 512), ("conv4_3", 512, 512),
    ("conv4_4", 512, 512), ("pool", 0, 0),
    ("conv5_1", 512, 512), ("conv5_2", 512, 512),
]


def _round_up(x, m):
    return (x + m - 1) // m * m


# ---------------------------------------------------------------------------
# Pallas kernel 1: tiled, pipelined matmul + bias + ReLU (bf16 in, f32 accumulate)
# ---------------------------------------------------------------------------
def _matmul_bias_relu_kernel(a_ref, b_ref, bias_ref, o_ref, acc_ref):
    k = pl.program_id(2)

    @pl.when(k == 0)
    def _():
        acc_ref[...] = jnp.zeros_like(acc_ref)

    acc_ref[...] += jnp.dot(a_ref[...], b_ref[...],
                            preferred_element_type=jnp.float32)

    @pl.when(k == pl.num_programs(2) - 1)
    def _():
        o_ref[...] = jnp.maximum(acc_ref[...] + bias_ref[...], 0.0).astype(o_ref.dtype)


def matmul_bias_relu(a_bf16, b_bf16, bias):
    """a: (M, K) bf16, b: (K, N) bf16, bias: (N,) f32 -> relu(a @ b + bias) in f32."""
    M, K = a_bf16.shape
    K2, N = b_bf16.shape
    assert K == K2
    # Tile selection: lane dims multiples of 128; 256-wide output tiles (2x256 MXU on
    # v6e/v7x, harmless on v5e); K tile chosen to divide the 128-rounded K (no extra pad).
    Mp0 = _round_up(M, 8)
    tm = Mp0 if Mp0 < 256 else 256
    Kp0 = _round_up(K, 128)
    tk = next(t for t in (512, 384, 256, 128) if Kp0 % t == 0)
    Np0 = _round_up(N, 128)
    tn = next(t for t in (256, 128) if Np0 % t == 0)
    Mp, Kp, Np = _round_up(M, tm), Kp0, Np0

    a = jnp.pad(a_bf16, ((0, Mp - M), (0, Kp - K)))
    b = jnp.pad(b_bf16, ((0, Kp - K), (0, Np - N)))
    bias2 = jnp.pad(bias.astype(jnp.float32), (0, Np - N)).reshape(1, Np)

    out = pl.pallas_call(
        _matmul_bias_relu_kernel,
        out_shape=jax.ShapeDtypeStruct((Mp, Np), jnp.float32),
        grid=(Mp // tm, Np // tn, Kp // tk),
        in_specs=[
            pl.BlockSpec((tm, tk), lambda i, j, k: (i, k)),
            pl.BlockSpec((tk, tn), lambda i, j, k: (k, j)),
            pl.BlockSpec((1, tn), lambda i, j, k: (0, j)),
        ],
        out_specs=pl.BlockSpec((tm, tn), lambda i, j, k: (i, j)),
        scratch_shapes=[pltpu.VMEM((tm, tn), jnp.float32)],
        compiler_params=pltpu.CompilerParams(
            dimension_semantics=("parallel", "parallel", "arbitrary")),
    )(a, b, bias2)
    return out[:M, :N]


def conv3x3_relu(x, w_bf16, b):
    """x: (N, H, W, Cin) f32 NHWC, w: (3, 3, Cin, Cout) bf16, b: (Cout,) f32."""
    N, H, W, Cin = x.shape
    Cout = w_bf16.shape[-1]
    xp = jnp.pad(x.astype(jnp.bfloat16), ((0, 0), (1, 1), (1, 1), (0, 0)))
    # TODO(synk): fuse the 9-tap halo gather into the Pallas kernel (manual halo DMA /
    # emit_pipeline) to avoid materializing the 9x im2col patches in HBM; for now the
    # patches are materialized in bf16 (half the previous f32 traffic).
    cols = [xp[:, dy:dy + H, dx:dx + W, :] for dy in range(3) for dx in range(3)]
    patches = jnp.concatenate(cols, axis=-1).reshape(N * H * W, 9 * Cin)
    wmat = w_bf16.reshape(9 * Cin, Cout)
    out = matmul_bias_relu(patches, wmat, b)
    return out.reshape(N, H, W, Cout)


# ---------------------------------------------------------------------------
# Pallas kernel 2: 2x2 max pool (stride 2), NHWC-direct, grid over (N, H tiles)
# ---------------------------------------------------------------------------
def _maxpool_kernel(x_ref, o_ref):
    tho, wo, c = o_ref.shape[1], o_ref.shape[2], o_ref.shape[3]
    x = x_ref[0]                                     # (2*tho, Wo, 2*C)
    xr = x.reshape(tho, 2, wo, 2 * c)
    m = jnp.maximum(xr[:, 0], xr[:, 1])              # vertical 2-max   (tho, Wo, 2C)
    o_ref[0] = jnp.maximum(m[..., :c], m[..., c:])   # horizontal 2-max (tho, Wo, C)


def maxpool2x2(x):
    N, H, W, C = x.shape
    Ho, Wo = H // 2, W // 2
    # Free (bitcast) reshape: fold W-pairs into the lane dim -> no HBM transpose.
    y = x.reshape(N, H, Wo, 2 * C)
    tho = next(t for t in (8, 4, 2, 1) if Ho % t == 0)
    return pl.pallas_call(
        _maxpool_kernel,
        out_shape=jax.ShapeDtypeStruct((N, Ho, Wo, C), x.dtype),
        grid=(N, Ho // tho),
        in_specs=[pl.BlockSpec((1, 2 * tho, Wo, 2 * C), lambda n, i: (n, i, 0, 0))],
        out_specs=pl.BlockSpec((1, tho, Wo, C), lambda n, i: (n, i, 0, 0)),
        compiler_params=pltpu.CompilerParams(
            dimension_semantics=("parallel", "parallel")),
    )(y)


# ---------------------------------------------------------------------------
# Pallas kernel 3: SWD criterion (project -> sort -> L1), grid over (batch, P tiles)
# ---------------------------------------------------------------------------
def _sort_rows(x):
    """Ascending sort of each row of x (P, L) via rank + one-hot (O(L^2), L small)."""
    P, L = x.shape
    xi = x[:, :, None]                                           # (P, L, 1)
    xj = x[:, None, :]                                           # (P, 1, L)
    i_idx = jax.lax.broadcasted_iota(jnp.int32, (P, L, L), 1)
    j_idx = jax.lax.broadcasted_iota(jnp.int32, (P, L, L), 2)
    before = jnp.logical_or(xj < xi, jnp.logical_and(xj == xi, j_idx < i_idx))
    rank = jnp.sum(before.astype(jnp.int32), axis=2)             # (P, L)
    onehot = (rank[:, :, None] == j_idx).astype(x.dtype)         # (P, L_src, L_dst)
    # TODO(synk): for large L replace with a bitonic network (pltpu.roll) / MXU gather;
    # the live set is already bounded to (tileP, L, L) by the P-tile grid axis.
    return jnp.sum(x[:, :, None] * onehot, axis=1)               # (P, L)


def _swd_kernel(projn_ref, true_ref, fake_ref, out_ref, acc_ref):
    p_idx = pl.program_id(1)
    projn = projn_ref[...]                                       # (tp, C) pre-normalized
    t = true_ref[0]                                              # (L, C)
    f = fake_ref[0]
    # Contract over C directly on (L, C) features -> no HBM (N,C,L) transpose needed.
    pt = jnp.einsum('pc,lc->pl', projn, t, preferred_element_type=jnp.float32)
    pf = jnp.einsum('pc,lc->pl', projn, f, preferred_element_type=jnp.float32)
    partial = jnp.sum(jnp.abs(_sort_rows(pt) - _sort_rows(pf)))

    @pl.when(p_idx == 0)
    def _():
        acc_ref[...] = jnp.zeros_like(acc_ref)

    acc_ref[...] += partial

    @pl.when(p_idx == pl.num_programs(1) - 1)
    def _():
        out_ref[0] = acc_ref[...]


def swd_level(true_nlc, fake_nlc, proj):
    """true/fake: (N, L, C) f32, proj: (P, C) f32 -> mean |sort(pt) - sort(pf)|."""
    N, L, C = true_nlc.shape
    P = proj.shape[0]
    # Hoisted out of the kernel: F.normalize(p=2, dim=1, eps=1e-12) of the projections.
    projn = proj / jnp.maximum(
        jnp.sqrt(jnp.sum(proj * proj, axis=1, keepdims=True)), 1e-12)
    tp = 128 if P % 128 == 0 else P
    out = pl.pallas_call(
        _swd_kernel,
        out_shape=jax.ShapeDtypeStruct((N, 1, 1), jnp.float32),
        grid=(N, P // tp),
        in_specs=[
            pl.BlockSpec((tp, C), lambda n, p: (p, 0)),
            pl.BlockSpec((1, L, C), lambda n, p: (n, 0, 0)),
            pl.BlockSpec((1, L, C), lambda n, p: (n, 0, 0)),
        ],
        out_specs=pl.BlockSpec((1, 1, 1), lambda n, p: (n, 0, 0)),
        scratch_shapes=[pltpu.VMEM((1, 1), jnp.float32)],
        compiler_params=pltpu.CompilerParams(
            dimension_semantics=("parallel", "arbitrary")),
    )(projn, true_nlc, fake_nlc)
    return jnp.sum(out) / jnp.float32(N * P * L)


def swd_level_ref(true_nlc, fake_nlc, proj):
    """Pure-JAX reference for the SWD criterion (sanity check only)."""
    projn = proj / jnp.maximum(jnp.linalg.norm(proj, axis=1, keepdims=True), 1e-12)
    pt = jnp.einsum('pc,nlc->npl', projn, true_nlc)
    pf = jnp.einsum('pc,nlc->npl', projn, fake_nlc)
    return jnp.mean(jnp.abs(jnp.sort(pt, axis=2) - jnp.sort(pf, axis=2)))


# ---------------------------------------------------------------------------
# VGG19 feature extractor (relu3_2 / relu4_2 / relu5_2) built from the kernels above
# ---------------------------------------------------------------------------
def init_vgg_params(key):
    params = {}
    for item in VGG_CFG:
        if item[0] == "pool":
            continue
        name, cin, cout = item
        key, wk = jax.random.split(key)
        std = (2.0 / (9 * cin)) ** 0.5  # He init (stand-in for pretrained VGG19 weights)
        w = jax.random.normal(wk, (3, 3, cin, cout), jnp.float32) * std
        params[name] = (w.astype(jnp.bfloat16), jnp.zeros((cout,), jnp.float32))
    return params


def vgg_features(x_nhwc, params):
    h = x_nhwc
    feats = {}
    for item in VGG_CFG:
        if item[0] == "pool":
            h = maxpool2x2(h)
        else:
            name = item[0]
            w, b = params[name]
            h = conv3x3_relu(h, w, b)
            feats["relu" + name[4:]] = h
    return feats


def swd_loss(img1_nchw, img2_nchw, params, projections):
    """Forward pass of SWDLoss.  Inputs are NCHW images (PyTorch convention)."""
    x = jnp.transpose(img1_nchw, (0, 2, 3, 1)).astype(jnp.float32)  # NCHW -> NHWC
    y = jnp.transpose(img2_nchw, (0, 2, 3, 1)).astype(jnp.float32)
    x = (x - IMAGENET_MEAN) / IMAGENET_STD                          # normalize_batch
    y = (y - IMAGENET_MEAN) / IMAGENET_STD
    fx = vgg_features(x, params)
    fy = vgg_features(y, params)

    loss = jnp.float32(0.0)
    for level, weight in (("relu3_2", 1.0), ("relu4_2", 1.0), ("relu5_2", 2.0)):
        a, b = fx[level], fy[level]
        N, H, W, C = a.shape
        # Free reshape to (N, L, C) -- no HBM transpose; sort axis is order-invariant so
        # this matches torch's .view(N, C, -1) followed by a sort along the last axis.
        a_nlc = a.reshape(N, H * W, C)
        b_nlc = b.reshape(N, H * W, C)
        # SWD.forward(fake_samples=x_feat, true_samples=y_feat) -- symmetric in L1.
        loss = loss + weight * swd_level(b_nlc, a_nlc, projections[level])
    return loss


if __name__ == "__main__":
    key = jax.random.PRNGKey(0)
    kp, kproj, k1, k2, kt, kf, ka, kb, kbias = jax.random.split(key, 9)

    params = init_vgg_params(kp)

    # Deterministic stand-ins for np.random.normal projections (num_projections = C // 2).
    feat_channels = {"relu3_2": 256, "relu4_2": 512, "relu5_2": 512}
    projections = {}
    for name, C in feat_channels.items():
        kproj, kk = jax.random.split(kproj)
        projections[name] = jax.random.normal(kk, (C // 2, C), jnp.float32)

    # Sanity check 1: tiled matmul+bias+relu kernel (exercises M/N/K tiling + padding).
    a_chk = jax.random.normal(ka, (520, 1152), jnp.float32).astype(jnp.bfloat16)
    b_chk = jax.random.normal(kb, (1152, 200), jnp.float32).astype(jnp.bfloat16)
    bias_chk = jax.random.normal(kbias, (200,), jnp.float32)
    got_mm = jax.jit(matmul_bias_relu)(a_chk, b_chk, bias_chk)
    want_mm = jnp.maximum(
        jnp.dot(a_chk.astype(jnp.float32), b_chk.astype(jnp.float32)) + bias_chk, 0.0)
    assert jnp.allclose(got_mm, want_mm, rtol=2e-2, atol=2e-2), "matmul kernel mismatch"

    # Sanity check 2: SWD Pallas kernel against a pure-JAX reference ((N, L, C) inputs).
    t_chk = jax.random.normal(kt, (2, 16, 256), jnp.float32)
    f_chk = jax.random.normal(kf, (2, 16, 256), jnp.float32)
    got = jax.jit(swd_level)(t_chk, f_chk, projections["relu3_2"])
    want = swd_level_ref(t_chk, f_chk, projections["relu3_2"])
    assert jnp.allclose(got, want, rtol=1e-3, atol=1e-3), (got, want)

    # Small, module-consistent input: H, W must be divisible by 16 (4 maxpools).
    img1 = jax.random.uniform(k1, (2, 3, 16, 16), jnp.float32)
    img2 = jax.random.uniform(k2, (2, 3, 16, 16), jnp.float32)

    loss_fn = jax.jit(swd_loss)
    loss = loss_fn(img1, img2, params, projections)
    jax.block_until_ready(loss)
    assert bool(jnp.isfinite(loss)), "loss is not finite"
    print("KERNEL_OK")
</pallas_src>

<mosaic_0001>
module attributes {stable_mosaic.version = 11 : i64} {
  func.func @_matmul_bias_relu_kernel(%arg0: i32, %arg1: i32, %arg2: i32, %arg3: memref<256x384xbf16, #tpu.memory_space<vmem>>, %arg4: memref<384x256xbf16, #tpu.memory_space<vmem>>, %arg5: memref<1x256xf32, #tpu.memory_space<vmem>>, %arg6: memref<256x256xf32, #tpu.memory_space<vmem>>, %arg7: memref<256x256xf32, #tpu.memory_space<vmem>>) attributes {dimension_semantics = [#tpu.dimension_semantics<parallel>, #tpu.dimension_semantics<parallel>, #tpu.dimension_semantics<arbitrary>], iteration_bounds = array<i64: 3, 1, 3>, scalar_prefetch = 0 : i64, scratch_operands = 1 : i64, tpu.core_type = #tpu.core_type<tc>, window_params = [{transform_indices = @transform_0, window_bounds = array<i64: 256, 384>}, {transform_indices = @transform_1, window_bounds = array<i64: 384, 256>}, {transform_indices = @transform_2, window_bounds = array<i64: 1, 256>}, {transform_indices = @transform_3, window_bounds = array<i64: 256, 256>}]} {
    %c0_i32 = arith.constant 0 : i32
    %0 = arith.cmpi eq, %arg2, %c0_i32 : i32
    %1 = arith.extui %0 : i1 to i32
    %c0_i32_0 = arith.constant 0 : i32
    %2 = arith.cmpi ne, %1, %c0_i32_0 : i32
    scf.if %2 {
      %cst_9 = arith.constant 0.000000e+00 : f32
      %12 = vector.broadcast %cst_9 : f32 to vector<256x256xf32>
      %c0_10 = arith.constant 0 : index
      %c0_11 = arith.constant 0 : index
      %13 = vector.load %arg7[%c0_10, %c0_11] : memref<256x256xf32, #tpu.memory_space<vmem>>, vector<256x256xf32>
      tpu.vector_store %arg7[%c0_10, %c0_11], %12 {strides = array<i32>} : memref<256x256xf32, #tpu.memory_space<vmem>>, vector<256x256xf32>,
    } else {
    }
    %c0 = arith.constant 0 : index
    %c0_1 = arith.constant 0 : index
    %3 = vector.load %arg7[%c0, %c0_1] : memref<256x256xf32, #tpu.memory_space<vmem>>, vector<256x256xf32>
    %c0_2 = arith.constant 0 : index
    %c0_3 = arith.constant 0 : index
    %4 = vector.load %arg3[%c0_2, %c0_3] : memref<256x384xbf16, #tpu.memory_space<vmem>>, vector<256x384xbf16>
    %c0_4 = arith.constant 0 : index
    %c0_5 = arith.constant 0 : index
    %5 = vector.load %arg4[%c0_4, %c0_5] : memref<384x256xbf16, #tpu.memory_space<vmem>>, vector<384x256xbf16>
    %cst = arith.constant dense<0.000000e+00> : vector<256x256xf32>
    %6 = tpu.matmul %4, %5, %cst {dimension_numbers = #tpu.dot_dimension_numbers<[1], [0], [0], [1], [0, 0, 1, 1], [], []>} : vector<256x384xbf16>, vector<384x256xbf16>, vector<256x256xf32> -> vector<256x256xf32>
    %7 = arith.addf %3, %6 : vector<256x256xf32>
    %c0_6 = arith.constant 0 : index
    %c0_7 = arith.constant 0 : index
    %8 = vector.load %arg7[%c0_6, %c0_7] : memref<256x256xf32, #tpu.memory_space<vmem>>, vector<256x256xf32>
    tpu.vector_store %arg7[%c0_6, %c0_7], %7 {strides = array<i32>} : memref<256x256xf32, #tpu.memory_space<vmem>>, vector<256x256xf32>,
    %c2_i32 = arith.constant 2 : i32
    %9 = arith.cmpi eq, %arg2, %c2_i32 : i32
    %10 = arith.extui %9 : i1 to i32
    %c0_i32_8 = arith.constant 0 : i32
    %11 = arith.cmpi ne, %10, %c0_i32_8 : i32
    scf.if %11 {
      %c0_9 = arith.constant 0 : index
      %c0_10 = arith.constant 0 : index
      %12 = vector.load %arg7[%c0_9, %c0_10] : memref<256x256xf32, #tpu.memory_space<vmem>>, vector<256x256xf32>
      %c0_11 = arith.constant 0 : index
      %c0_12 = arith.constant 0 : index
      %13 = vector.load %arg5[%c0_11, %c0_12] : memref<1x256xf32, #tpu.memory_space<vmem>>, vector<1x256xf32>
      %14 = vector.broadcast %13 : vector<1x256xf32> to vector<256x256xf32>
      %15 = arith.addf %12, %14 : vector<256x256xf32>
      %cst_13 = arith.constant 0.000000e+00 : f32
      %16 = vector.broadcast %cst_13 : f32 to vector<256x256xf32>
      %17 = arith.maximumf %15, %16 : vector<256x256xf32>
      %c0_14 = arith.constant 0 : index
      %c0_15 = arith.constant 0 : index
      %18 = vector.load %arg6[%c0_14, %c0_15] : memref<256x256xf32, #tpu.memory_space<vmem>>, vector<256x256xf32>
      tpu.vector_store %arg6[%c0_14, %c0_15], %17 {strides = array<i32>} : memref<256x256xf32, #tpu.memory_space<vmem>>, vector<256x256xf32>,
    } else {
    }
    return
  }
  func.func @transform_0(%arg0: i32, %arg1: i32, %arg2: i32) -> (i32, i32) {
    %c0_i32 = arith.constant 0 : i32
    return %arg0, %arg2 : i32, i32
  }
  func.func @transform_1(%arg0: i32, %arg1: i32, %arg2: i32) -> (i32, i32) {
    %c0_i32 = arith.constant 0 : i32
    return %arg2, %arg1 : i32, i32
  }
  func.func @transform_2(%arg0: i32, %arg1: i32, %arg2: i32) -> (i32, i32) {
    %c0_i32 = arith.constant 0 : i32
    %c0_i32_0 = arith.constant 0 : i32
    return %c0_i32, %arg1 : i32, i32
  }
  func.func @transform_3(%arg0: i32, %arg1: i32, %arg2: i32) -> (i32, i32) {
    %c0_i32 = arith.constant 0 : i32
    return %arg0, %arg1 : i32, i32
  }
}

</mosaic_0001>

<llo_original>
// kernel: matmul_bias_relu.1
$region0: #{matmul_bias_relu.1}
  #allocation0 [shape = 'u32[]', space=smem, size = 0x4, offset = 0x4, fixed_abs, tag = 'smem constant byte address 0x4 - core index']
  #allocation1 [shape = 'u32[144,128]{1,0:T(1,128)}', space=vmem, size = 0x12000, scoped, tag = 'internal scratch']
  #allocation2 [shape = 'f32[256,256]{1,0:T(8,128)}', space=vmem, size = 0x40000, scoped, tag = 'scratch operand']
  %s0 = inlined_call_operand.vmem [shape: bf16[768,1152], index: 0, kind: input, shape index: {}]
  %s1 = inlined_call_operand.vmem [shape: bf16[1152,256], index: 1, kind: input, shape index: {}]
  %s2 = inlined_call_operand.vmem [shape: f32[1,256], index: 2, kind: input, shape index: {}]
  %s3 = inlined_call_operand.vmem [shape: f32[768,256], index: 3, kind: output, shape index: {}]
  %s4 = sld [smem:[#allocation0]]
  $region79: #{matmul_bias_relu.1} parent=0
    _
  %s6 = ssub.s32 1, %s4
  %s7 = scalar_select 0, %s6, %s4
  $region1: #{matmul_bias_relu.1} parent=0
    #allocation3 [shape = 'u8[393216]{0}', space=vmem, size = 0x60000, scoped, tag = 'input window, operand 0']
    loop: start=0, step=1, limit=11
    $region2: #{matmul_bias_relu.1} parent=1 // loop_pre_header
      _
    $region3: #{matmul_bias_relu.1} parent=1 // loop_header
      %s9 = sphi 0, %s13
      %p10 = scmp.ge.s32.totalorder %s9, 11
      %s16 = sphi 0, %s35
      %s17 = sphi 0, %s31
      %s18 = sphi 0, %s27
      %s19 = sphi 0, %s16
      %s20 = sphi 0, %s17
      %s21 = sphi 0, %s18
      %s22 = sphi 0, %s19
      %s23 = sphi 0, %s20
      %s24 = sphi 0, %s21
      %s40 = sphi 0, %s42
      %s43 = sphi 0, %s40
      %s44 = sphi 0, %s43
      %s60 = sphi 0, %s44
      %s68 = sphi 0, %s70
      %s71 = sphi 0, %s68
      %s72 = sphi 0, %s71
      %s88 = sphi 0, %s72
      %s94 = sphi 0, %s96
      %s97 = sphi 0, %s94
      %s98 = sphi 0, %s97
      %s114 = sphi 0, %s98
      %s122 = sphi 0, %s124
      %s125 = sphi 0, %s122
      %s126 = sphi 0, %s125
      %s142 = sphi 0, %s126
    $region4: #{matmul_bias_relu.1} parent=1 // loop_header_branch
      %12 = sbr.rel (%p10) target = $region8
    $region5: #{matmul_bias_relu.1} parent=1 // loop_body
      %s14 = ssub.s32 %s9, 1
      %s15 = ssub.s32 %s9, 2
      %s25 = sadd.s32 1, %s18
      %p26 = scmp.ge.s32.totalorder %s25, 3
      %s27 = scalar_select %p26, 0, %s25
      %s28 = sadd.s32 1, %s17
      %s29 = scalar_select %p26, %s28, %s17
      %p30 = scmp.ge.s32.totalorder %s29, 1
      %s31 = scalar_select %p30, 0, %s29
      %s32 = sadd.s32 1, %s16
      %s33 = scalar_select %p30, %s32, %s16
      %p34 = scmp.ge.s32.totalorder %s33, 3
      %s35 = scalar_select %p34, 0, %s33
      %s36 = ssub.s32 %s16, %s35
      %s37 = ssub.s32 %s18, %s27
      %s38 = sor.u32 %s36, %s37
      %p39 = scmp.eq.s32.totalorder %s38, 0
      %s41 = sadd.s32 %s40, 1
      %s42 = scalar_select %p39, %s40, %s41
      %p45 = pneg %p39
      %p46 = scmp.eq.s32.totalorder %s9, 8
      %p47 = por %p45, %p46
      %p48 = scmp.ne.s32.totalorder %s40, %s43
      %p49 = scmp.eq.s32.totalorder %s9, 0
      %p50 = por %p48, %p49
      %p51 = scmp.ne.s32.totalorder %s40, %s43
      %p52 = scmp.eq.s32.totalorder %s14, 8
      %p53 = por %p51, %p52
      %p54 = scmp.ne.s32.totalorder %s43, %s44
      %p55 = scmp.eq.s32.totalorder %s14, 0
      %p56 = por %p54, %p55
      %p57 = scmp.ne.s32.totalorder %s43, %s44
      %p58 = scmp.eq.s32.totalorder %s15, 8
      %p59 = por %p57, %p58
      %p61 = scmp.ne.s32.totalorder %s44, %s60
      %p62 = scmp.eq.s32.totalorder %s15, 0
      %p63 = por %p61, %p62
      %s64 = ssub.s32 %s18, %s27
      %s65 = ssub.s32 %s17, %s31
      %s66 = sor.u32 %s64, %s65
      %p67 = scmp.eq.s32.totalorder %s66, 0
      %s69 = sadd.s32 %s68, 1
      %s70 = scalar_select %p67, %s68, %s69
      %p73 = pneg %p67
      %p74 = scmp.eq.s32.totalorder %s9, 8
      %p75 = por %p73, %p74
      %p76 = scmp.ne.s32.totalorder %s68, %s71
      %p77 = scmp.eq.s32.totalorder %s9, 0
      %p78 = por %p76, %p77
      %p79 = scmp.ne.s32.totalorder %s68, %s71
      %p80 = scmp.eq.s32.totalorder %s14, 8
      %p81 = por %p79, %p80
      %p82 = scmp.ne.s32.totalorder %s71, %s72
      %p83 = scmp.eq.s32.totalorder %s14, 0
      %p84 = por %p82, %p83
      %p85 = scmp.ne.s32.totalorder %s71, %s72
      %p86 = scmp.eq.s32.totalorder %s15, 8
      %p87 = por %p85, %p86
      %p89 = scmp.ne.s32.totalorder %s72, %s88
      %p90 = scmp.eq.s32.totalorder %s15, 0
      %p91 = por %p89, %p90
      %s92 = ssub.s32 %s17, %s31
      %p93 = scmp.eq.s32.totalorder %s92, 0
      %s95 = sadd.s32 %s94, 1
      %s96 = scalar_select %p93, %s94, %s95
      %p99 = pneg %p93
      %p100 = scmp.eq.s32.totalorder %s9, 8
      %p101 = por %p99, %p100
      %p102 = scmp.ne.s32.totalorder %s94, %s97
      %p103 = scmp.eq.s32.totalorder %s9, 0
      %p104 = por %p102, %p103
      %p105 = scmp.ne.s32.totalorder %s94, %s97
      %p106 = scmp.eq.s32.totalorder %s14, 8
      %p107 = por %p105, %p106
      %p108 = scmp.ne.s32.totalorder %s97, %s98
      %p109 = scmp.eq.s32.totalorder %s14, 0
      %p110 = por %p108, %p109
      %p111 = scmp.ne.s32.totalorder %s97, %s98
      %p112 = scmp.eq.s32.totalorder %s15, 8
      %p113 = por %p111, %p112
      %p115 = scmp.ne.s32.totalorder %s98, %s114
      %p116 = scmp.eq.s32.totalorder %s15, 0
      %p117 = por %p115, %p116
      %s118 = ssub.s32 %s16, %s35
      %s119 = ssub.s32 %s17, %s31
      %s120 = sor.u32 %s118, %s119
      %p121 = scmp.eq.s32.totalorder %s120, 0
      %s123 = sadd.s32 %s122, 1
      %s124 = scalar_select %p121, %s122, %s123
      %p127 = pneg %p121
      %p128 = scmp.eq.s32.totalorder %s9, 8
      %p129 = por %p127, %p128
      %p130 = scmp.ne.s32.totalorder %s122, %s125
      %p131 = scmp.eq.s32.totalorder %s9, 0
      %p132 = por %p130, %p131
      %p133 = scmp.ne.s32.totalorder %s122, %s125
      %p134 = scmp.eq.s32.totalorder %s14, 8
      %p135 = por %p133, %p134
      %p136 = scmp.ne.s32.totalorder %s125, %s126
      %p137 = scmp.eq.s32.totalorder %s14, 0
      %p138 = por %p136, %p137
      %p139 = scmp.ne.s32.totalorder %s125, %s126
      %p140 = scmp.eq.s32.totalorder %s15, 8
      %p141 = por %p139, %p140
      %p143 = scmp.ne.s32.totalorder %s126, %s142
      %p144 = scmp.eq.s32.totalorder %s15, 0
      %p145 = por %p143, %p144
      %p146 = scmp.le.s32.totalorder 1, %s9
      %p147 = scmp.lt.s32.totalorder %s9, 10
      %p148 = pnand %p146, %p147
      %p149 = pneg %p148
      // Predicated region
      $region9: #{matmul_bias_relu.1} parent=5 // pred_check
        _
      $region10: #{matmul_bias_relu.1} parent=5 // pred_check_branch
        %151 = sbr.rel (%p148) target = $region12
      $region11: #{matmul_bias_relu.1} parent=5 // pred_region
        %s152 = ssub.s32 %s9, 1
        // Predicated region
        $region13: #{matmul_bias_relu.1} parent=11 // pred_check
          %p153 = pneg %p110
        $region14: #{matmul_bias_relu.1} parent=11 // pred_check_branch
          %155 = sbr.rel (%p153) target = $region16
        $region15: #{matmul_bias_relu.1} parent=11 // pred_region
          %s156 = smul.u32 2, %s20
          %p157 = scmp.lt.s32.totalorder %s156, 1
          %s158 = scalar_select %p157, %s156, 1
          %s159 = scalar_lea.vmem %s2, %s158
          %s160 = smul.u32 2, %s20
        $region16: #{matmul_bias_relu.1} parent=11 // pred_fallthru
          _
      $region12: #{matmul_bias_relu.1} parent=5 // pred_fallthru
        _
      %p161 = scmp.lt.s32.totalorder %s9, 9
      // Predicated region
      $region17: #{matmul_bias_relu.1} parent=5 // pred_check
        %p162 = pneg %p161
      $region18: #{matmul_bias_relu.1} parent=5 // pred_check_branch
        %164 = sbr.rel (%p162) target = $region20
      $region19: #{matmul_bias_relu.1} parent=5 // pred_region
        // Predicated region
        $region21: #{matmul_bias_relu.1} parent=19 // pred_check
          %p165 = pneg %p50
        $region22: #{matmul_bias_relu.1} parent=19 // pred_check_branch
          %167 = sbr.rel (%p165) target = $region24
        $region23: #{matmul_bias_relu.1} parent=19 // pred_region
          %s168 = sand.u32 %s40, 1
          %s169 = sand.u32 %s40, 1
          %s170 = smul.addr %s169, 384
          %s171 = scalar_lea.vmem [#allocation3], %s170
          %s172 = smul.u32 32, %s16
          %s173 = smul.u32 3, %s18
          %s174 = smul.addr %s172, 9
          %s175 = sadd.s32 %s173, %s174
          %s176 = smul.addr %s175, 4
          %s177 = scalar_lea.vmem %s0, %s176
          // Predicated region
          $region25: #{matmul_bias_relu.1} parent=23 // pred_check
            _
          $region26: #{matmul_bias_relu.1} parent=23 // pred_check_branch
            %179 = sbr.rel (0) target = $region28
          $region27: #{matmul_bias_relu.1} parent=23 // pred_region
            // Predicated region
            $region29: #{matmul_bias_relu.1} parent=27 // pred_check
              _
            $region30: #{matmul_bias_relu.1} parent=27 // pred_check_branch
              %181 = sbr.rel (0) target = $region32
            $region31: #{matmul_bias_relu.1} parent=27 // pred_region
              %s182 = scalar_lea.vmem %s177, 8
              %s183 = scalar_lea.vmem %s171, 8 [#allocation3]
              loop: start=0, step=1, limit=1
              $region33: #{matmul_bias_relu.1} parent=31 // loop_pre_header
                _
              $region34: #{matmul_bias_relu.1} parent=31 // loop_header
                %s185 = sphi 0, %s189
                %p186 = scmp.ge.s32.totalorder %s185, 1
                %s190 = sphi %s177, %s177
                %s191 = sphi %s171, %s171
              $region35: #{matmul_bias_relu.1} parent=31 // loop_header_branch
                %188 = sbr.rel (%p186) target = $region39
              $region36: #{matmul_bias_relu.1} parent=31 // loop_body
                %v192 = vld [vmem:[%s190] sm:$0xff]
                %193 = vst [vmem:[%s191] sm:$0xff] %v192
                %v194 = vld [vmem:[%s190 + $0x24] sm:$0xff]
                %195 = vst [vmem:[%s191 + $0xc] sm:$0xff] %v194
                %v196 = vld [vmem:[%s190 + $0x48] sm:$0xff]
                %197 = vst [vmem:[%s191 + $0x18] sm:$0xff] %v196
                %v198 = vld [vmem:[%s190 + $0x6c] sm:$0xff]
                %199 = vst [vmem:[%s191 + $0x24] sm:$0xff] %v198
                %v200 = vld [vmem:[%s190 + $0x90] sm:$0xff]
                %201 = vst [vmem:[%s191 + $0x30] sm:$0xff] %v200
                %v202 = vld [vmem:[%s190 + $0xb4] sm:$0xff]
                %203 = vst [vmem:[%s191 + $0x3c] sm:$0xff] %v202
                %v204 = vld [vmem:[%s190 + $0xd8] sm:$0xff]
                %205 = vst [vmem:[%s191 + $0x48] sm:$0xff] %v204
                %v206 = vld [vmem:[%s190 + $0xfc] sm:$0xff]
                %207 = vst [vmem:[%s191 + $0x54] sm:$0xff] %v206
                %v208 = vld [vmem:[%s190 + $0x120] sm:$0xff]
                %209 = vst [vmem:[%s191 + $0x60] sm:$0xff] %v208
                %v210 = vld [vmem:[%s190 + $0x144] sm:$0xff]
                %211 = vst [vmem:[%s191 + $0x6c] sm:$0xff] %v210
                %v212 = vld [vmem:[%s190 + $0x168] sm:$0xff]
                %213 = vst [vmem:[%s191 + $0x78] sm:$0xff] %v212
                %v214 = vld [vmem:[%s190 + $0x18c] sm:$0xff]
                %215 = vst [vmem:[%s191 + $0x84] sm:$0xff] %v214
                %v216 = vld [vmem:[%s190 + $0x1b0] sm:$0xff]
                %217 = vst [vmem:[%s191 + $0x90] sm:$0xff] %v216
                %v218 = vld [vmem:[%s190 + $0x1d4] sm:$0xff]
                %219 = vst [vmem:[%s191 + $0x9c] sm:$0xff] %v218
                %v220 = vld [vmem:[%s190 + $0x1f8] sm:$0xff]
                %221 = vst [vmem:[%s191 + $0xa8] sm:$0xff] %v220
                %v222 = vld [vmem:[%s190 + $0x21c] sm:$0xff]
                %223 = vst [vmem:[%s191 + $0xb4] sm:$0xff] %v222
                %v224 = vld [vmem:[%s190 + $0x240] sm:$0xff]
                %225 = vst [vmem:[%s191 + $0xc0] sm:$0xff] %v224
                %v226 = vld [vmem:[%s190 + $0x264] sm:$0xff]
                %227 = vst [vmem:[%s191 + $0xcc] sm:$0xff] %v226
                %v228 = vld [vmem:[%s190 + $0x288] sm:$0xff]
                %229 = vst [vmem:[%s191 + $0xd8] sm:$0xff] %v228
                %v230 = vld [vmem:[%s190 + $0x2ac] sm:$0xff]
                %231 = vst [vmem:[%s191 + $0xe4] sm:$0xff] %v230
                %v232 = vld [vmem:[%s190 + $0x2d0] sm:$0xff]
                %233 = vst [vmem:[%s191 + $0xf0] sm:$0xff] %v232
                %v234 = vld [vmem:[%s190 + $0x2f4] sm:$0xff]
                %235 = vst [vmem:[%s191 + $0xfc] sm:$0xff] %v234
                %v236 = vld [vmem:[%s190 + $0x318] sm:$0xff]
                %237 = vst [vmem:[%s191 + $0x108] sm:$0xff] %v236
                %v238 = vld [vmem:[%s190 + $0x33c] sm:$0xff]
                %239 = vst [vmem:[%s191 + $0x114] sm:$0xff] %v238
                %v240 = vld [vmem:[%s190 + $0x360] sm:$0xff]
                %241 = vst [vmem:[%s191 + $0x120] sm:$0xff] %v240
                %v242 = vld [vmem:[%s190 + $0x384] sm:$0xff]
                %243 = vst [vmem:[%s191 + $0x12c] sm:$0xff] %v242
                %v244 = vld [vmem:[%s190 + $0x3a8] sm:$0xff]
                %245 = vst [vmem:[%s191 + $0x138] sm:$0xff] %v244
                %v246 = vld [vmem:[%s190 + $0x3cc] sm:$0xff]
                %247 = vst [vmem:[%s191 + $0x144] sm:$0xff] %v246
                %v248 = vld [vmem:[%s190 + $0x3f0] sm:$0xff]
                %249 = vst [vmem:[%s191 + $0x150] sm:$0xff] %v248
                %v250 = vld [vmem:[%s190 + $0x414] sm:$0xff]
                %251 = vst [vmem:[%s191 + $0x15c] sm:$0xff] %v250
                %v252 = vld [vmem:[%s190 + $0x438] sm:$0xff]
                %253 = vst [vmem:[%s191 + $0x168] sm:$0xff] %v252
                %v254 = vld [vmem:[%s190 + $0x45c] sm:$0xff]
                %255 = vst [vmem:[%s191 + $0x174] sm:$0xff] %v254
              $region37: #{matmul_bias_relu.1} parent=31 // loop_footer
                %s189 = sadd.s32 1, %s185
              $region38: #{matmul_bias_relu.1} parent=31 // loop_footer_branch
                %184 = sbr.rel target = $region34
              $region39: #{matmul_bias_relu.1} parent=31 // loop_exit
                _
              loop: start=0, step=1, limit=1
              $region40: #{matmul_bias_relu.1} parent=31 // loop_pre_header
                _
              $region41: #{matmul_bias_relu.1} parent=31 // loop_header
                %s258 = sphi 0, %s262
                %p259 = scmp.ge.s32.totalorder %s258, 1
                %s263 = sphi %s182, %s182
                %s264 = sphi %s183, %s183
              $region42: #{matmul_bias_relu.1} parent=31 // loop_header_branch
                %261 = sbr.rel (%p259) target = $region46
              $region43: #{matmul_bias_relu.1} parent=31 // loop_body
                %v265 = vld [vmem:[%s263] sm:$0xf]
                %266 = vst [vmem:[%s264] sm:$0xf] %v265
                %v267 = vld [vmem:[%s263 + $0x24] sm:$0xf]
                %268 = vst [vmem:[%s264 + $0xc] sm:$0xf] %v267
                %v269 = vld [vmem:[%s263 + $0x48] sm:$0xf]
                %270 = vst [vmem:[%s264 + $0x18] sm:$0xf] %v269
                %v271 = vld [vmem:[%s263 + $0x6c] sm:$0xf]
                %272 = vst [vmem:[%s264 + $0x24] sm:$0xf] %v271
                %v273 = vld [vmem:[%s263 + $0x90] sm:$0xf]
                %274 = vst [vmem:[%s264 + $0x30] sm:$0xf] %v273
                %v275 = vld [vmem:[%s263 + $0xb4] sm:$0xf]
                %276 = vst [vmem:[%s264 + $0x3c] sm:$0xf] %v275
                %v277 = vld [vmem:[%s263 + $0xd8] sm:$0xf]
                %278 = vst [vmem:[%s264 + $0x48] sm:$0xf] %v277
                %v279 = vld [vmem:[%s263 + $0xfc] sm:$0xf]
                %280 = vst [vmem:[%s264 + $0x54] sm:$0xf] %v279
                %v281 = vld [vmem:[%s263 + $0x120] sm:$0xf]
                %282 = vst [vmem:[%s264 + $0x60] sm:$0xf] %v281
                %v283 = vld [vmem:[%s263 + $0x144] sm:$0xf]
                %284 = vst [vmem:[%s264 + $0x6c] sm:$0xf] %v283
                %v285 = vld [vmem:[%s263 + $0x168] sm:$0xf]
                %286 = vst [vmem:[%s264 + $0x78] sm:$0xf] %v285
                %v287 = vld [vmem:[%s263 + $0x18c] sm:$0xf]
                %288 = vst [vmem:[%s264 + $0x84] sm:$0xf] %v287
                %v289 = vld [vmem:[%s263 + $0x1b0] sm:$0xf]
                %290 = vst [vmem:[%s264 + $0x90] sm:$0xf] %v289
                %v291 = vld [vmem:[%s263 + $0x1d4] sm:$0xf]
                %292 = vst [vmem:[%s264 + $0x9c] sm:$0xf] %v291
                %v293 = vld [vmem:[%s263 + $0x1f8] sm:$0xf]
                %294 = vst [vmem:[%s264 + $0xa8] sm:$0xf] %v293
                %v295 = vld [vmem:[%s263 + $0x21c] sm:$0xf]
                %296 = vst [vmem:[%s264 + $0xb4] sm:$0xf] %v295
                %v297 = vld [vmem:[%s263 + $0x240] sm:$0xf]
                %298 = vst [vmem:[%s264 + $0xc0] sm:$0xf] %v297
                %v299 = vld [vmem:[%s263 + $0x264] sm:$0xf]
                %300 = vst [vmem:[%s264 + $0xcc] sm:$0xf] %v299
                %v301 = vld [vmem:[%s263 + $0x288] sm:$0xf]
                %302 = vst [vmem:[%s264 + $0xd8] sm:$0xf] %v301
                %v303 = vld [vmem:[%s263 + $0x2ac] sm:$0xf]
                %304 = vst [vmem:[%s264 + $0xe4] sm:$0xf] %v303
                %v305 = vld [vmem:[%s263 + $0x2d0] sm:$0xf]
                %306 = vst [vmem:[%s264 + $0xf0] sm:$0xf] %v305
                %v307 = vld [vmem:[%s263 + $0x2f4] sm:$0xf]
                %308 = vst [vmem:[%s264 + $0xfc] sm:$0xf] %v307
                %v309 = vld [vmem:[%s263 + $0x318] sm:$0xf]
                %310 = vst [vmem:[%s264 + $0x108] sm:$0xf] %v309
                %v311 = vld [vmem:[%s263 + $0x33c] sm:$0xf]
                %312 = vst [vmem:[%s264 + $0x114] sm:$0xf] %v311
                %v313 = vld [vmem:[%s263 + $0x360] sm:$0xf]
                %314 = vst [vmem:[%s264 + $0x120] sm:$0xf] %v313
                %v315 = vld [vmem:[%s263 + $0x384] sm:$0xf]
                %316 = vst [vmem:[%s264 + $0x12c] sm:$0xf] %v315
                %v317 = vld [vmem:[%s263 + $0x3a8] sm:$0xf]
                %318 = vst [vmem:[%s264 + $0x138] sm:$0xf] %v317
                %v319 = vld [vmem:[%s263 + $0x3cc] sm:$0xf]
                %320 = vst [vmem:[%s264 + $0x144] sm:$0xf] %v319
                %v321 = vld [vmem:[%s263 + $0x3f0] sm:$0xf]
                %322 = vst [vmem:[%s264 + $0x150] sm:$0xf] %v321
                %v323 = vld [vmem:[%s263 + $0x414] sm:$0xf]
                %324 = vst [vmem:[%s264 + $0x15c] sm:$0xf] %v323
                %v325 = vld [vmem:[%s263 + $0x438] sm:$0xf]
                %326 = vst [vmem:[%s264 + $0x168] sm:$0xf] %v325
                %v327 = vld [vmem:[%s263 + $0x45c] sm:$0xf]
                %328 = vst [vmem:[%s264 + $0x174] sm:$0xf] %v327
              $region44: #{matmul_bias_relu.1} parent=31 // loop_footer
                %s262 = sadd.s32 1, %s258
              $region45: #{matmul_bias_relu.1} parent=31 // loop_footer_branch
                %257 = sbr.rel target = $region41
              $region46: #{matmul_bias_relu.1} parent=31 // loop_exit
                _
            $region32: #{matmul_bias_relu.1} parent=27 // pred_fallthru
              _
          $region28: #{matmul_bias_relu.1} parent=23 // pred_fallthru
            _
          %329 = vnop
        $region24: #{matmul_bias_relu.1} parent=19 // pred_fallthru
          _
        // Predicated region
        $region47: #{matmul_bias_relu.1} parent=19 // pred_check
          %p330 = pneg %p78
        $region48: #{matmul_bias_relu.1} parent=19 // pred_check_branch
          %332 = sbr.rel (%p330) target = $region50
        $region49: #{matmul_bias_relu.1} parent=19 // pred_region
          %s333 = smul.u32 48, %s18
          %s334 = smul.u32 2, %s17
          %p335 = scmp.lt.s32.totalorder %s333, 143
          %s336 = scalar_select %p335, %s333, 143
          %p337 = scmp.lt.s32.totalorder %s334, 1
          %s338 = scalar_select %p337, %s334, 1
          %s339 = smul.addr %s336, 2
          %s340 = sadd.s32 %s338, %s339
          %s341 = smul.addr %s340, 4
          %s342 = scalar_lea.vmem %s1, %s341
          %s343 = smul.u32 48, %s18
          %s344 = smul.u32 2, %s17
        $region50: #{matmul_bias_relu.1} parent=19 // pred_fallthru
          _
      $region20: #{matmul_bias_relu.1} parent=5 // pred_fallthru
        _
      %p345 = scmp.le.s32.totalorder 1, %s9
      %p346 = scmp.lt.s32.totalorder %s9, 10
      %p347 = pnand %p345, %p346
      %p348 = pneg %p347
      // Predicated region
      $region51: #{matmul_bias_relu.1} parent=5 // pred_check
        _
      $region52: #{matmul_bias_relu.1} parent=5 // pred_check_branch
        %350 = sbr.rel (%p347) target = $region54
      $region53: #{matmul_bias_relu.1} parent=5 // pred_region
        %s351 = ssub.s32 %s9, 1
        %s352 = sand.u32 %s43, 1
        %s353 = sand.u32 %s43, 1
        %s354 = smul.addr %s353, 384
        %s355 = scalar_lea.vmem [#allocation3], %s354
        // Predicated region
        $region55: #{matmul_bias_relu.1} parent=53 // pred_check
          %p356 = pneg %p56
        $region56: #{matmul_bias_relu.1} parent=53 // pred_check_branch
          %358 = sbr.rel (%p356) target = $region58
        $region57: #{matmul_bias_relu.1} parent=53 // pred_region
          _
        $region58: #{matmul_bias_relu.1} parent=53 // pred_fallthru
          _
        %s359 = sand.u32 %s43, 1
        %s360 = sand.u32 %s43, 1
        %s361 = smul.addr %s360, 384
        %s362 = scalar_lea.vmem [#allocation3], %s361
        %p363 = pneg %p56
        %p364 = pneg %p53
        %s365 = smul.u32 48, %s21
        %s366 = smul.u32 2, %s20
        %p367 = scmp.lt.s32.totalorder %s365, 143
        %s368 = scalar_select %p367, %s365, 143
        %p369 = scmp.lt.s32.totalorder %s366, 1
        %s370 = scalar_select %p369, %s366, 1
        %s371 = smul.addr %s368, 2
        %s372 = sadd.s32 %s370, %s371
        %s373 = smul.addr %s372, 4
        %s374 = scalar_lea.vmem %s1, %s373
        %p375 = pneg %p84
        %p376 = pneg %p81
        %s377 = smul.u32 2, %s20
        %p378 = scmp.lt.s32.totalorder %s377, 1
        %s379 = scalar_select %p378, %s377, 1
        %s380 = scalar_lea.vmem %s2, %s379
        %p381 = pneg %p110
        %p382 = pneg %p107
        %p383 = pneg %p138
        %p384 = pneg %p135
        %s385 = smul.u32 32, %s19
        %s386 = smul.u32 2, %s20
        %p387 = scmp.lt.s32.totalorder %s385, 95
        %s388 = scalar_select %p387, %s385, 95
        %p389 = scmp.lt.s32.totalorder %s386, 1
        %s390 = scalar_select %p389, %s386, 1
        %s391 = smul.addr %s388, 2
        %s392 = sadd.s32 %s390, %s391
        %s393 = smul.addr %s392, 8
        %s394 = scalar_lea.vmem %s3, %s393
        %s395 = smul.u32 32, %s19
        %s396 = smul.u32 3, %s21
        %s397 = smul.u32 48, %s21
        %s398 = smul.u32 2, %s20
        %p399 = scmp.lt.s32.totalorder %s397, 143
        %s400 = scalar_select %p399, %s397, 143
        %p401 = scmp.lt.s32.totalorder %s398, 1
        %s402 = scalar_select %p401, %s398, 1
        %s403 = smul.addr %s400, 2
        %s404 = sadd.s32 %s402, %s403
        %s405 = smul.addr %s404, 4
        %s406 = scalar_lea.vmem %s1, %s405
        %s407 = smul.u32 48, %s21
        %s408 = smul.u32 2, %s20
        %s409 = smul.u32 2, %s20
        %p410 = scmp.lt.s32.totalorder %s409, 1
        %s411 = scalar_select %p410, %s409, 1
        %s412 = scalar_lea.vmem %s2, %s411
        %s413 = smul.u32 2, %s20
        %s414 = smul.u32 32, %s19
        %s415 = smul.u32 2, %s20
        %p416 = scmp.lt.s32.totalorder %s414, 95
        %s417 = scalar_select %p416, %s414, 95
        %p418 = scmp.lt.s32.totalorder %s415, 1
        %s419 = scalar_select %p418, %s415, 1
        %s420 = smul.addr %s417, 2
        %s421 = sadd.s32 %s419, %s420
        %s422 = smul.addr %s421, 8
        %s423 = scalar_lea.vmem %s3, %s422
        %s424 = smul.u32 32, %s19
        %s425 = smul.u32 2, %s20
        %p427 = scmp.eq.s32.totalorder %s21, 0
        // Predicated region
        $region59: #{matmul_bias_relu.1} parent=53 // pred_check
          %p428 = pneg %p427
        $region60: #{matmul_bias_relu.1} parent=53 // pred_check_branch
          %430 = sbr.rel (%p428) target = $region62
        $region61: #{matmul_bias_relu.1} parent=53 // pred_region
          %431 = vst [vmem:[#allocation2] sm:$0xff] 0.0
          %432 = vst [vmem:[#allocation2 + $0x8] sm:$0xff] 0.0
          %433 = vst [vmem:[#allocation2 + $0x10] sm:$0xff] 0.0
          %434 = vst [vmem:[#allocation2 + $0x18] sm:$0xff] 0.0
          %435 = vst [vmem:[#allocation2 + $0x20] sm:$0xff] 0.0
          %436 = vst [vmem:[#allocation2 + $0x28] sm:$0xff] 0.0
          %437 = vst [vmem:[#allocation2 + $0x30] sm:$0xff] 0.0
          %438 = vst [vmem:[#allocation2 + $0x38] sm:$0xff] 0.0
          %439 = vst [vmem:[#allocation2 + $0x40] sm:$0xff] 0.0
          %440 = vst [vmem:[#allocation2 + $0x48] sm:$0xff] 0.0
          %441 = vst [vmem:[#allocation2 + $0x50] sm:$0xff] 0.0
          %442 = vst [vmem:[#allocation2 + $0x58] sm:$0xff] 0.0
          %443 = vst [vmem:[#allocation2 + $0x60] sm:$0xff] 0.0
          %444 = vst [vmem:[#allocation2 + $0x68] sm:$0xff] 0.0
          %445 = vst [vmem:[#allocation2 + $0x70] sm:$0xff] 0.0
          %446 = vst [vmem:[#allocation2 + $0x78] sm:$0xff] 0.0
          %447 = vst [vmem:[#allocation2 + $0x80] sm:$0xff] 0.0
          %448 = vst [vmem:[#allocation2 + $0x88] sm:$0xff] 0.0
          %449 = vst [vmem:[#allocation2 + $0x90] sm:$0xff] 0.0
          %450 = vst [vmem:[#allocation2 + $0x98] sm:$0xff] 0.0
          %451 = vst [vmem:[#allocation2 + $0xa0] sm:$0xff] 0.0
          %452 = vst [vmem:[#allocation2 + $0xa8] sm:$0xff] 0.0
          %453 = vst [vmem:[#allocation2 + $0xb0] sm:$0xff] 0.0
          %454 = vst [vmem:[#allocation2 + $0xb8] sm:$0xff] 0.0
          %455 = vst [vmem:[#allocation2 + $0xc0] sm:$0xff] 0.0
          %456 = vst [vmem:[#allocation2 + $0xc8] sm:$0xff] 0.0
          %457 = vst [vmem:[#allocation2 + $0xd0] sm:$0xff] 0.0
          %458 = vst [vmem:[#allocation2 + $0xd8] sm:$0xff] 0.0
          %459 = vst [vmem:[#allocation2 + $0xe0] sm:$0xff] 0.0
          %460 = vst [vmem:[#allocation2 + $0xe8] sm:$0xff] 0.0
          %461 = vst [vmem:[#allocation2 + $0xf0] sm:$0xff] 0.0
          %462 = vst [vmem:[#allocation2 + $0xf8] sm:$0xff] 0.0
          %463 = vst [vmem:[#allocation2 + $0x100] sm:$0xff] 0.0
          %464 = vst [vmem:[#allocation2 + $0x108] sm:$0xff] 0.0
          %465 = vst [vmem:[#allocation2 + $0x110] sm:$0xff] 0.0
          %466 = vst [vmem:[#allocation2 + $0x118] sm:$0xff] 0.0
          %467 = vst [vmem:[#allocation2 + $0x120] sm:$0xff] 0.0
          %468 = vst [vmem:[#allocation2 + $0x128] sm:$0xff] 0.0
          %469 = vst [vmem:[#allocation2 + $0x130] sm:$0xff] 0.0
          %470 = vst [vmem:[#allocation2 + $0x138] sm:$0xff] 0.0
          %471 = vst [vmem:[#allocation2 + $0x140] sm:$0xff] 0.0
          %472 = vst [vmem:[#allocation2 + $0x148] sm:$0xff] 0.0
          %473 = vst [vmem:[#allocation2 + $0x150] sm:$0xff] 0.0
          %474 = vst [vmem:[#allocation2 + $0x158] sm:$0xff] 0.0
          %475 = vst [vmem:[#allocation2 + $0x160] sm:$0xff] 0.0
          %476 = vst [vmem:[#allocation2 + $0x168] sm:$0xff] 0.0
          %477 = vst [vmem:[#allocation2 + $0x170] sm:$0xff] 0.0
          %478 = vst [vmem:[#allocation2 + $0x178] sm:$0xff] 0.0
          %479 = vst [vmem:[#allocation2 + $0x180] sm:$0xff] 0.0
          %480 = vst [vmem:[#allocation2 + $0x188] sm:$0xff] 0.0
          %481 = vst [vmem:[#allocation2 + $0x190] sm:$0xff] 0.0
          %482 = vst [vmem:[#allocation2 + $0x198] sm:$0xff] 0.0
          %483 = vst [vmem:[#allocation2 + $0x1a0] sm:$0xff] 0.0
          %484 = vst [vmem:[#allocation2 + $0x1a8] sm:$0xff] 0.0
          %485 = vst [vmem:[#allocation2 + $0x1b0] sm:$0xff] 0.0
          %486 = vst [vmem:[#allocation2 + $0x1b8] sm:$0xff] 0.0
          %487 = vst [vmem:[#allocation2 + $0x1c0] sm:$0xff] 0.0
          %488 = vst [vmem:[#allocation2 + $0x1c8] sm:$0xff] 0.0
          %489 = vst [vmem:[#allocation2 + $0x1d0] sm:$0xff] 0.0
          %490 = vst [vmem:[#allocation2 + $0x1d8] sm:$0xff] 0.0
          %491 = vst [vmem:[#allocation2 + $0x1e0] sm:$0xff] 0.0
          %492 = vst [vmem:[#allocation2 + $0x1e8] sm:$0xff] 0.0
          %493 = vst [vmem:[#allocation2 + $0x1f0] sm:$0xff] 0.0
          %494 = vst [vmem:[#allocation2 + $0x1f8] sm:$0xff] 0.0
        $region62: #{matmul_bias_relu.1} parent=53 // pred_fallthru
          _
        %v495 = vld [vmem:[#allocation2] sm:$0xff]
        %v496 = vld [vmem:[#allocation2 + $0x8] sm:$0xff]
        %v497 = vld [vmem:[#allocation2 + $0x10] sm:$0xff]
        %v498 = vld [vmem:[#allocation2 + $0x18] sm:$0xff]
        %v499 = vld [vmem:[#allocation2 + $0x20] sm:$0xff]
        %v500 = vld [vmem:[#allocation2 + $0x28] sm:$0xff]
        %v501 = vld [vmem:[#allocation2 + $0x30] sm:$0xff]
        %v502 = vld [vmem:[#allocation2 + $0x38] sm:$0xff]
        %v503 = vld [vmem:[#allocation2 + $0x40] sm:$0xff]
        %v504 = vld [vmem:[#allocation2 + $0x48] sm:$0xff]
        %v505 = vld [vmem:[#allocation2 + $0x50] sm:$0xff]
        %v506 = vld [vmem:[#allocation2 + $0x58] sm:$0xff]
        %v507 = vld [vmem:[#allocation2 + $0x60] sm:$0xff]
        %v508 = vld [vmem:[#allocation2 + $0x68] sm:$0xff]
        %v509 = vld [vmem:[#allocation2 + $0x70] sm:$0xff]
        %v510 = vld [vmem:[#allocation2 + $0x78] sm:$0xff]
        %v511 = vld [vmem:[#allocation2 + $0x80] sm:$0xff]
        %v512 = vld [vmem:[#allocation2 + $0x88] sm:$0xff]
        %v513 = vld [vmem:[#allocation2 + $0x90] sm:$0xff]
        %v514 = vld [vmem:[#allocation2 + $0x98] sm:$0xff]
        %v515 = vld [vmem:[#allocation2 + $0xa0] sm:$0xff]
        %v516 = vld [vmem:[#allocation2 + $0xa8] sm:$0xff]
        %v517 = vld [vmem:[#allocation2 + $0xb0] sm:$0xff]
        %v518 = vld [vmem:[#allocation2 + $0xb8] sm:$0xff]
        %v519 = vld [vmem:[#allocation2 + $0xc0] sm:$0xff]
        %v520 = vld [vmem:[#allocation2 + $0xc8] sm:$0xff]
        %v521 = vld [vmem:[#allocation2 + $0xd0] sm:$0xff]
        %v522 = vld [vmem:[#allocation2 + $0xd8] sm:$0xff]
        %v523 = vld [vmem:[#allocation2 + $0xe0] sm:$0xff]
        %v524 = vld [vmem:[#allocation2 + $0xe8] sm:$0xff]
        %v525 = vld [vmem:[#allocation2 + $0xf0] sm:$0xff]
        %v526 = vld [vmem:[#allocation2 + $0xf8] sm:$0xff]
        %v527 = vld [vmem:[#allocation2 + $0x100] sm:$0xff]
        %v528 = vld [vmem:[#allocation2 + $0x108] sm:$0xff]
        %v529 = vld [vmem:[#allocation2 + $0x110] sm:$0xff]
        %v530 = vld [vmem:[#allocation2 + $0x118] sm:$0xff]
        %v531 = vld [vmem:[#allocation2 + $0x120] sm:$0xff]
        %v532 = vld [vmem:[#allocation2 + $0x128] sm:$0xff]
        %v533 = vld [vmem:[#allocation2 + $0x130] sm:$0xff]
        %v534 = vld [vmem:[#allocation2 + $0x138] sm:$0xff]
        %v535 = vld [vmem:[#allocation2 + $0x140] sm:$0xff]
        %v536 = vld [vmem:[#allocation2 + $0x148] sm:$0xff]
        %v537 = vld [vmem:[#allocation2 + $0x150] sm:$0xff]
        %v538 = vld [vmem:[#allocation2 + $0x158] sm:$0xff]
        %v539 = vld [vmem:[#allocation2 + $0x160] sm:$0xff]
        %v540 = vld [vmem:[#allocation2 + $0x168] sm:$0xff]
        %v541 = vld [vmem:[#allocation2 + $0x170] sm:$0xff]
        %v542 = vld [vmem:[#allocation2 + $0x178] sm:$0xff]
        %v543 = vld [vmem:[#allocation2 + $0x180] sm:$0xff]
        %v544 = vld [vmem:[#allocation2 + $0x188] sm:$0xff]
        %v545 = vld [vmem:[#allocation2 + $0x190] sm:$0xff]
        %v546 = vld [vmem:[#allocation2 + $0x198] sm:$0xff]
        %v547 = vld [vmem:[#allocation2 + $0x1a0] sm:$0xff]
        %v548 = vld [vmem:[#allocation2 + $0x1a8] sm:$0xff]
        %v549 = vld [vmem:[#allocation2 + $0x1b0] sm:$0xff]
        %v550 = vld [vmem:[#allocation2 + $0x1b8] sm:$0xff]
        %v551 = vld [vmem:[#allocation2 + $0x1c0] sm:$0xff]
        %v552 = vld [vmem:[#allocation2 + $0x1c8] sm:$0xff]
        %v553 = vld [vmem:[#allocation2 + $0x1d0] sm:$0xff]
        %v554 = vld [vmem:[#allocation2 + $0x1d8] sm:$0xff]
        %v555 = vld [vmem:[#allocation2 + $0x1e0] sm:$0xff]
        %v556 = vld [vmem:[#allocation2 + $0x1e8] sm:$0xff]
        %v557 = vld [vmem:[#allocation2 + $0x1f0] sm:$0xff]
        %v558 = vld [vmem:[#allocation2 + $0x1f8] sm:$0xff]
        %v559 = vld [vmem:[%s355] sm:$0xff]
        %v560 = vld [vmem:[%s355 + $0x8] sm:$0xf]
        %v561 = vld [vmem:[%s355 + $0xc] sm:$0xff]
        %v562 = vld [vmem:[%s355 + $0x14] sm:$0xf]
        %v563 = vld [vmem:[%s355 + $0x18] sm:$0xff]
        %v564 = vld [vmem:[%s355 + $0x20] sm:$0xf]
        %v565 = vld [vmem:[%s355 + $0x24] sm:$0xff]
        %v566 = vld [vmem:[%s355 + $0x2c] sm:$0xf]
        %v567 = vld [vmem:[%s355 + $0x30] sm:$0xff]
        %v568 = vld [vmem:[%s355 + $0x38] sm:$0xf]
        %v569 = vld [vmem:[%s355 + $0x3c] sm:$0xff]
        %v570 = vld [vmem:[%s355 + $0x44] sm:$0xf]
        %v571 = vld [vmem:[%s355 + $0x48] sm:$0xff]
        %v572 = vld [vmem:[%s355 + $0x50] sm:$0xf]
        %v573 = vld [vmem:[%s355 + $0x54] sm:$0xff]
        %v574 = vld [vmem:[%s355 + $0x5c] sm:$0xf]
        %v575 = vld [vmem:[%s355 + $0x60] sm:$0xff]
        %v576 = vld [vmem:[%s355 + $0x68] sm:$0xf]
        %v577 = vld [vmem:[%s355 + $0x6c] sm:$0xff]
        %v578 = vld [vmem:[%s355 + $0x74] sm:$0xf]
        %v579 = vld [vmem:[%s355 + $0x78] sm:$0xff]
        %v580 = vld [vmem:[%s355 + $0x80] sm:$0xf]
        %v581 = vld [vmem:[%s355 + $0x84] sm:$0xff]
        %v582 = vld [vmem:[%s355 + $0x8c] sm:$0xf]
        %v583 = vld [vmem:[%s355 + $0x90] sm:$0xff]
        %v584 = vld [vmem:[%s355 + $0x98] sm:$0xf]
        %v585 = vld [vmem:[%s355 + $0x9c] sm:$0xff]
        %v586 = vld [vmem:[%s355 + $0xa4] sm:$0xf]
        %v587 = vld [vmem:[%s355 + $0xa8] sm:$0xff]
        %v588 = vld [vmem:[%s355 + $0xb0] sm:$0xf]
        %v589 = vld [vmem:[%s355 + $0xb4] sm:$0xff]
        %v590 = vld [vmem:[%s355 + $0xbc] sm:$0xf]
        %v591 = vld [vmem:[%s355 + $0xc0] sm:$0xff]
        %v592 = vld [vmem:[%s355 + $0xc8] sm:$0xf]
        %v593 = vld [vmem:[%s355 + $0xcc] sm:$0xff]
        %v594 = vld [vmem:[%s355 + $0xd4] sm:$0xf]
        %v595 = vld [vmem:[%s355 + $0xd8] sm:$0xff]
        %v596 = vld [vmem:[%s355 + $0xe0] sm:$0xf]
        %v597 = vld [vmem:[%s355 + $0xe4] sm:$0xff]
        %v598 = vld [vmem:[%s355 + $0xec] sm:$0xf]
        %v599 = vld [vmem:[%s355 + $0xf0] sm:$0xff]
        %v600 = vld [vmem:[%s355 + $0xf8] sm:$0xf]
        %v601 = vld [vmem:[%s355 + $0xfc] sm:$0xff]
        %v602 = vld [vmem:[%s355 + $0x104] sm:$0xf]
        %v603 = vld [vmem:[%s355 + $0x108] sm:$0xff]
        %v604 = vld [vmem:[%s355 + $0x110] sm:$0xf]
        %v605 = vld [vmem:[%s355 + $0x114] sm:$0xff]
        %v606 = vld [vmem:[%s355 + $0x11c] sm:$0xf]
        %v607 = vld [vmem:[%s355 + $0x120] sm:$0xff]
        %v608 = vld [vmem:[%s355 + $0x128] sm:$0xf]
        %v609 = vld [vmem:[%s355 + $0x12c] sm:$0xff]
        %v610 = vld [vmem:[%s355 + $0x134] sm:$0xf]
        %v611 = vld [vmem:[%s355 + $0x138] sm:$0xff]
        %v612 = vld [vmem:[%s355 + $0x140] sm:$0xf]
        %v613 = vld [vmem:[%s355 + $0x144] sm:$0xff]
        %v614 = vld [vmem:[%s355 + $0x14c] sm:$0xf]
        %v615 = vld [vmem:[%s355 + $0x150] sm:$0xff]
        %v616 = vld [vmem:[%s355 + $0x158] sm:$0xf]
        %v617 = vld [vmem:[%s355 + $0x15c] sm:$0xff]
        %v618 = vld [vmem:[%s355 + $0x164] sm:$0xf]
        %v619 = vld [vmem:[%s355 + $0x168] sm:$0xff]
        %v620 = vld [vmem:[%s355 + $0x170] sm:$0xf]
        %v621 = vld [vmem:[%s355 + $0x174] sm:$0xff]
        %v622 = vld [vmem:[%s355 + $0x17c] sm:$0xf]
        %v623 = vld [vmem:[%s406] sm:$0xff]
        %v624 = vld [vmem:[%s406 + $0x8] sm:$0xff]
        %v625 = vld [vmem:[%s406 + $0x10] sm:$0xff]
        %v626 = vld [vmem:[%s406 + $0x18] sm:$0xff]
        %v627 = vld [vmem:[%s406 + $0x20] sm:$0xff]
        %v628 = vld [vmem:[%s406 + $0x28] sm:$0xff]
        %v629 = vld [vmem:[%s406 + $0x30] sm:$0xff]
        %v630 = vld [vmem:[%s406 + $0x38] sm:$0xff]
        %v631 = vld [vmem:[%s406 + $0x40] sm:$0xff]
        %v632 = vld [vmem:[%s406 + $0x48] sm:$0xff]
        %v633 = vld [vmem:[%s406 + $0x50] sm:$0xff]
        %v634 = vld [vmem:[%s406 + $0x58] sm:$0xff]
        %v635 = vld [vmem:[%s406 + $0x60] sm:$0xff]
        %v636 = vld [vmem:[%s406 + $0x68] sm:$0xff]
        %v637 = vld [vmem:[%s406 + $0x70] sm:$0xff]
        %v638 = vld [vmem:[%s406 + $0x78] sm:$0xff]
        %v639 = vld [vmem:[%s406 + $0x80] sm:$0xff]
        %v640 = vld [vmem:[%s406 + $0x88] sm:$0xff]
        %v641 = vld [vmem:[%s406 + $0x90] sm:$0xff]
        %v642 = vld [vmem:[%s406 + $0x98] sm:$0xff]
        %v643 = vld [vmem:[%s406 + $0xa0] sm:$0xff]
        %v644 = vld [vmem:[%s406 + $0xa8] sm:$0xff]
        %v645 = vld [vmem:[%s406 + $0xb0] sm:$0xff]
        %v646 = vld [vmem:[%s406 + $0xb8] sm:$0xff]
        %v647 = vld [vmem:[%s406 + $0xc0] sm:$0xff]
        %v648 = vld [vmem:[%s406 + $0xc8] sm:$0xff]
        %v649 = vld [vmem:[%s406 + $0xd0] sm:$0xff]
        %v650 = vld [vmem:[%s406 + $0xd8] sm:$0xff]
        %v651 = vld [vmem:[%s406 + $0xe0] sm:$0xff]
        %v652 = vld [vmem:[%s406 + $0xe8] sm:$0xff]
        %v653 = vld [vmem:[%s406 + $0xf0] sm:$0xff]
        %v654 = vld [vmem:[%s406 + $0xf8] sm:$0xff]
        %v655 = vld [vmem:[%s406 + $0x100] sm:$0xff]
        %v656 = vld [vmem:[%s406 + $0x108] sm:$0xff]
        %v657 = vld [vmem:[%s406 + $0x110] sm:$0xff]
        %v658 = vld [vmem:[%s406 + $0x118] sm:$0xff]
        %v659 = vld [vmem:[%s406 + $0x120] sm:$0xff]
        %v660 = vld [vmem:[%s406 + $0x128] sm:$0xff]
        %v661 = vld [vmem:[%s406 + $0x130] sm:$0xff]
        %v662 = vld [vmem:[%s406 + $0x138] sm:$0xff]
        %v663 = vld [vmem:[%s406 + $0x140] sm:$0xff]
        %v664 = vld [vmem:[%s406 + $0x148] sm:$0xff]
        %v665 = vld [vmem:[%s406 + $0x150] sm:$0xff]
        %v666 = vld [vmem:[%s406 + $0x158] sm:$0xff]
        %v667 = vld [vmem:[%s406 + $0x160] sm:$0xff]
        %v668 = vld [vmem:[%s406 + $0x168] sm:$0xff]
        %v669 = vld [vmem:[%s406 + $0x170] sm:$0xff]
        %v670 = vld [vmem:[%s406 + $0x178] sm:$0xff]
        %v735 = vunpack.c.l.b16 %v559
        %v736 = vunpack.c.h.b16 %v559
        %v737 = vunpack.c.l.b16 %v560
        %v738 = vunpack.c.l.b16 %v561
        %v739 = vunpack.c.h.b16 %v561
        %v740 = vunpack.c.l.b16 %v562
        %v741 = vunpack.c.l.b16 %v563
        %v742 = vunpack.c.h.b16 %v563
        %v743 = vunpack.c.l.b16 %v564
        %v744 = vunpack.c.l.b16 %v565
        %v745 = vunpack.c.h.b16 %v565
        %v746 = vunpack.c.l.b16 %v566
        %v747 = vunpack.c.l.b16 %v567
        %v748 = vunpack.c.h.b16 %v567
        %v749 = vunpack.c.l.b16 %v568
        %v750 = vunpack.c.l.b16 %v569
        %v751 = vunpack.c.h.b16 %v569
        %v752 = vunpack.c.l.b16 %v570
        %v753 = vunpack.c.l.b16 %v571
        %v754 = vunpack.c.h.b16 %v571
        %v755 = vunpack.c.l.b16 %v572
        %v756 = vunpack.c.l.b16 %v573
        %v757 = vunpack.c.h.b16 %v573
        %v758 = vunpack.c.l.b16 %v574
        %v759 = vunpack.c.l.b16 %v575
        %v760 = vunpack.c.h.b16 %v575
        %v761 = vunpack.c.l.b16 %v576
        %v762 = vunpack.c.l.b16 %v577
        %v763 = vunpack.c.h.b16 %v577
        %v764 = vunpack.c.l.b16 %v578
        %v765 = vunpack.c.l.b16 %v579
        %v766 = vunpack.c.h.b16 %v579
        %v767 = vunpack.c.l.b16 %v580
        %v768 = vunpack.c.l.b16 %v581
        %v769 = vunpack.c.h.b16 %v581
        %v770 = vunpack.c.l.b16 %v582
        %v771 = vunpack.c.l.b16 %v583
        %v772 = vunpack.c.h.b16 %v583
        %v773 = vunpack.c.l.b16 %v584
        %v774 = vunpack.c.l.b16 %v585
        %v775 = vunpack.c.h.b16 %v585
        %v776 = vunpack.c.l.b16 %v586
        %v777 = vunpack.c.l.b16 %v587
        %v778 = vunpack.c.h.b16 %v587
        %v779 = vunpack.c.l.b16 %v588
        %v780 = vunpack.c.l.b16 %v589
        %v781 = vunpack.c.h.b16 %v589
        %v782 = vunpack.c.l.b16 %v590
        %v783 = vunpack.c.l.b16 %v591
        %v784 = vunpack.c.h.b16 %v591
        %v785 = vunpack.c.l.b16 %v592
        %v786 = vunpack.c.l.b16 %v593
        %v787 = vunpack.c.h.b16 %v593
        %v788 = vunpack.c.l.b16 %v594
        %v789 = vunpack.c.l.b16 %v595
        %v790 = vunpack.c.h.b16 %v595
        %v791 = vunpack.c.l.b16 %v596
        %v792 = vunpack.c.l.b16 %v597
        %v793 = vunpack.c.h.b16 %v597
        %v794 = vunpack.c.l.b16 %v598
        %v795 = vunpack.c.l.b16 %v599
        %v796 = vunpack.c.h.b16 %v599
        %v797 = vunpack.c.l.b16 %v600
        %v798 = vunpack.c.l.b16 %v601
        %v799 = vunpack.c.h.b16 %v601
        %v800 = vunpack.c.l.b16 %v602
        %v801 = vunpack.c.l.b16 %v603
        %v802 = vunpack.c.h.b16 %v603
        %v803 = vunpack.c.l.b16 %v604
        %v804 = vunpack.c.l.b16 %v605
        %v805 = vunpack.c.h.b16 %v605
        %v806 = vunpack.c.l.b16 %v606
        %v807 = vunpack.c.l.b16 %v607
        %v808 = vunpack.c.h.b16 %v607
        %v809 = vunpack.c.l.b16 %v608
        %v810 = vunpack.c.l.b16 %v609
        %v811 = vunpack.c.h.b16 %v609
        %v812 = vunpack.c.l.b16 %v610
        %v813 = vunpack.c.l.b16 %v611
        %v814 = vunpack.c.h.b16 %v611
        %v815 = vunpack.c.l.b16 %v612
        %v816 = vunpack.c.l.b16 %v613
        %v817 = vunpack.c.h.b16 %v613
        %v818 = vunpack.c.l.b16 %v614
        %v819 = vunpack.c.l.b16 %v615
        %v820 = vunpack.c.h.b16 %v615
        %v821 = vunpack.c.l.b16 %v616
        %v822 = vunpack.c.l.b16 %v617
        %v823 = vunpack.c.h.b16 %v617
        %v824 = vunpack.c.l.b16 %v618
        %v825 = vunpack.c.l.b16 %v619
        %v826 = vunpack.c.h.b16 %v619
        %v827 = vunpack.c.l.b16 %v620
        %v828 = vunpack.c.l.b16 %v621
        %v829 = vunpack.c.h.b16 %v621
        %v830 = vunpack.c.l.b16 %v622
        %v831 = vpack.c.b16 %v738, %v735
        %v832 = vpack.c.b16 %v739, %v736
        %v833 = vpack.c.b16 %v740, %v737
        %v834 = vpack.c.b16 %v744, %v741
        %v835 = vpack.c.b16 %v745, %v742
        %v836 = vpack.c.b16 %v746, %v743
        %v837 = vpack.c.b16 %v750, %v747
        %v838 = vpack.c.b16 %v751, %v748
        %v839 = vpack.c.b16 %v752, %v749
        %v840 = vpack.c.b16 %v756, %v753
        %v841 = vpack.c.b16 %v757, %v754
        %v842 = vpack.c.b16 %v758, %v755
        %v843 = vpack.c.b16 %v762, %v759
        %v844 = vpack.c.b16 %v763, %v760
        %v845 = vpack.c.b16 %v764, %v761
        %v846 = vpack.c.b16 %v768, %v765
        %v847 = vpack.c.b16 %v769, %v766
        %v848 = vpack.c.b16 %v770, %v767
        %v849 = vpack.c.b16 %v774, %v771
        %v850 = vpack.c.b16 %v775, %v772
        %v851 = vpack.c.b16 %v776, %v773
        %v852 = vpack.c.b16 %v780, %v777
        %v853 = vpack.c.b16 %v781, %v778
        %v854 = vpack.c.b16 %v782, %v779
        %v855 = vpack.c.b16 %v786, %v783
        %v856 = vpack.c.b16 %v787, %v784
        %v857 = vpack.c.b16 %v788, %v785
        %v858 = vpack.c.b16 %v792, %v789
        %v859 = vpack.c.b16 %v793, %v790
        %v860 = vpack.c.b16 %v794, %v791
        %v861 = vpack.c.b16 %v798, %v795
        %v862 = vpack.c.b16 %v799, %v796
        %v863 = vpack.c.b16 %v800, %v797
        %v864 = vpack.c.b16 %v804, %v801
        %v865 = vpack.c.b16 %v805, %v802
        %v866 = vpack.c.b16 %v806, %v803
        %v867 = vpack.c.b16 %v810, %v807
        %v868 = vpack.c.b16 %v811, %v808
        %v869 = vpack.c.b16 %v812, %v809
        %v870 = vpack.c.b16 %v816, %v813
        %v871 = vpack.c.b16 %v817, %v814
        %v872 = vpack.c.b16 %v818, %v815
        %v873 = vpack.c.b16 %v822, %v819
        %v874 = vpack.c.b16 %v823, %v820
        %v875 = vpack.c.b16 %v824, %v821
        %v876 = vpack.c.b16 %v828, %v825
        %v877 = vpack.c.b16 %v829, %v826
        %v878 = vpack.c.b16 %v830, %v827
        %v975 = vunpack.c.l.b16 %v623
        %v976 = vunpack.c.h.b16 %v623
        %v977 = vunpack.c.l.b16 %v624
        %v978 = vunpack.c.h.b16 %v624
        %v979 = vunpack.c.l.b16 %v625
        %v980 = vunpack.c.h.b16 %v625
        %v981 = vunpack.c.l.b16 %v626
        %v982 = vunpack.c.h.b16 %v626
        %v983 = vunpack.c.l.b16 %v627
        %v984 = vunpack.c.h.b16 %v627
        %v985 = vunpack.c.l.b16 %v628
        %v986 = vunpack.c.h.b16 %v628
        %v987 = vunpack.c.l.b16 %v629
        %v988 = vunpack.c.h.b16 %v629
        %v989 = vunpack.c.l.b16 %v630
        %v990 = vunpack.c.h.b16 %v630
        %v991 = vunpack.c.l.b16 %v631
        %v992 = vunpack.c.h.b16 %v631
        %v993 = vunpack.c.l.b16 %v632
        %v994 = vunpack.c.h.b16 %v632
        %v995 = vunpack.c.l.b16 %v633
        %v996 = vunpack.c.h.b16 %v633
        %v997 = vunpack.c.l.b16 %v634
        %v998 = vunpack.c.h.b16 %v634
        %v999 = vunpack.c.l.b16 %v635
        %v1000 = vunpack.c.h.b16 %v635
        %v1001 = vunpack.c.l.b16 %v636
        %v1002 = vunpack.c.h.b16 %v636
        %v1003 = vunpack.c.l.b16 %v637
        %v1004 = vunpack.c.h.b16 %v637
        %v1005 = vunpack.c.l.b16 %v638
        %v1006 = vunpack.c.h.b16 %v638
        %v1007 = vunpack.c.l.b16 %v639
        %v1008 = vunpack.c.h.b16 %v639
        %v1009 = vunpack.c.l.b16 %v640
        %v1010 = vunpack.c.h.b16 %v640
        %v1011 = vunpack.c.l.b16 %v641
        %v1012 = vunpack.c.h.b16 %v641
        %v1013 = vunpack.c.l.b16 %v642
        %v1014 = vunpack.c.h.b16 %v642
        %v1015 = vunpack.c.l.b16 %v643
        %v1016 = vunpack.c.h.b16 %v643
        %v1017 = vunpack.c.l.b16 %v644
        %v1018 = vunpack.c.h.b16 %v644
        %v1019 = vunpack.c.l.b16 %v645
        %v1020 = vunpack.c.h.b16 %v645
        %v1021 = vunpack.c.l.b16 %v646
        %v1022 = vunpack.c.h.b16 %v646
        %v1023 = vunpack.c.l.b16 %v647
        %v1024 = vunpack.c.h.b16 %v647
        %v1025 = vunpack.c.l.b16 %v648
        %v1026 = vunpack.c.h.b16 %v648
        %v1027 = vunpack.c.l.b16 %v649
        %v1028 = vunpack.c.h.b16 %v649
        %v1029 = vunpack.c.l.b16 %v650
        %v1030 = vunpack.c.h.b16 %v650
        %v1031 = vunpack.c.l.b16 %v651
        %v1032 = vunpack.c.h.b16 %v651
        %v1033 = vunpack.c.l.b16 %v652
        %v1034 = vunpack.c.h.b16 %v652
        %v1035 = vunpack.c.l.b16 %v653
        %v1036 = vunpack.c.h.b16 %v653
        %v1037 = vunpack.c.l.b16 %v654
        %v1038 = vunpack.c.h.b16 %v654
        %v1039 = vunpack.c.l.b16 %v655
        %v1040 = vunpack.c.h.b16 %v655
        %v1041 = vunpack.c.l.b16 %v656
        %v1042 = vunpack.c.h.b16 %v656
        %v1043 = vunpack.c.l.b16 %v657
        %v1044 = vunpack.c.h.b16 %v657
        %v1045 = vunpack.c.l.b16 %v658
        %v1046 = vunpack.c.h.b16 %v658
        %v1047 = vunpack.c.l.b16 %v659
        %v1048 = vunpack.c.h.b16 %v659
        %v1049 = vunpack.c.l.b16 %v660
        %v1050 = vunpack.c.h.b16 %v660
        %v1051 = vunpack.c.l.b16 %v661
        %v1052 = vunpack.c.h.b16 %v661
        %v1053 = vunpack.c.l.b16 %v662
        %v1054 = vunpack.c.h.b16 %v662
        %v1055 = vunpack.c.l.b16 %v663
        %v1056 = vunpack.c.h.b16 %v663
        %v1057 = vunpack.c.l.b16 %v664
        %v1058 = vunpack.c.h.b16 %v664
        %v1059 = vunpack.c.l.b16 %v665
        %v1060 = vunpack.c.h.b16 %v665
        %v1061 = vunpack.c.l.b16 %v666
        %v1062 = vunpack.c.h.b16 %v666
        %v1063 = vunpack.c.l.b16 %v667
        %v1064 = vunpack.c.h.b16 %v667
        %v1065 = vunpack.c.l.b16 %v668
        %v1066 = vunpack.c.h.b16 %v668
        %v1067 = vunpack.c.l.b16 %v669
        %v1068 = vunpack.c.h.b16 %v669
        %v1069 = vunpack.c.l.b16 %v670
        %v1070 = vunpack.c.h.b16 %v670
        %v1071 = vpack.c.b16 %v977, %v975
        %v1072 = vpack.c.b16 %v978, %v976
        %v1073 = vpack.c.b16 %v981, %v979
        %v1074 = vpack.c.b16 %v982, %v980
        %v1075 = vpack.c.b16 %v985, %v983
        %v1076 = vpack.c.b16 %v986, %v984
        %v1077 = vpack.c.b16 %v989, %v987
        %v1078 = vpack.c.b16 %v990, %v988
        %v1079 = vpack.c.b16 %v993, %v991
        %v1080 = vpack.c.b16 %v994, %v992
        %v1081 = vpack.c.b16 %v997, %v995
        %v1082 = vpack.c.b16 %v998, %v996
        %v1083 = vpack.c.b16 %v1001, %v999
        %v1084 = vpack.c.b16 %v1002, %v1000
        %v1085 = vpack.c.b16 %v1005, %v1003
        %v1086 = vpack.c.b16 %v1006, %v1004
        %v1087 = vpack.c.b16 %v1009, %v1007
        %v1088 = vpack.c.b16 %v1010, %v1008
        %v1089 = vpack.c.b16 %v1013, %v1011
        %v1090 = vpack.c.b16 %v1014, %v1012
        %v1091 = vpack.c.b16 %v1017, %v1015
        %v1092 = vpack.c.b16 %v1018, %v1016
        %v1093 = vpack.c.b16 %v1021, %v1019
        %v1094 = vpack.c.b16 %v1022, %v1020
        %v1095 = vpack.c.b16 %v1025, %v1023
        %v1096 = vpack.c.b16 %v1026, %v1024
        %v1097 = vpack.c.b16 %v1029, %v1027
        %v1098 = vpack.c.b16 %v1030, %v1028
        %v1099 = vpack.c.b16 %v1033, %v1031
        %v1100 = vpack.c.b16 %v1034, %v1032
        %v1101 = vpack.c.b16 %v1037, %v1035
        %v1102 = vpack.c.b16 %v1038, %v1036
        %v1103 = vpack.c.b16 %v1041, %v1039
        %v1104 = vpack.c.b16 %v1042, %v1040
        %v1105 = vpack.c.b16 %v1045, %v1043
        %v1106 = vpack.c.b16 %v1046, %v1044
        %v1107 = vpack.c.b16 %v1049, %v1047
        %v1108 = vpack.c.b16 %v1050, %v1048
        %v1109 = vpack.c.b16 %v1053, %v1051
        %v1110 = vpack.c.b16 %v1054, %v1052
        %v1111 = vpack.c.b16 %v1057, %v1055
        %v1112 = vpack.c.b16 %v1058, %v1056
        %v1113 = vpack.c.b16 %v1061, %v1059
        %v1114 = vpack.c.b16 %v1062, %v1060
        %v1115 = vpack.c.b16 %v1065, %v1063
        %v1116 = vpack.c.b16 %v1066, %v1064
        %v1117 = vpack.c.b16 %v1069, %v1067
        %v1118 = vpack.c.b16 %v1070, %v1068
        %1167 = vmatprep.subr.bf16.mxu0 %v1072
        %1168 = vmatpush1.bf16.msra.mxu0 %v1071
        %1169 = vmatprep.subr.bf16.mxu0 %v1074
        %1170 = vmatpush1.bf16.msra.mxu0 %v1073
        %1171 = vmatprep.subr.bf16.mxu0 %v1076
        %1172 = vmatpush1.bf16.msra.mxu0 %v1075
        %1173 = vmatprep.subr.bf16.mxu0 %v1078
        %1174 = vmatpush1.bf16.msra.mxu0 %v1077
        %1175 = vmatprep.subr.bf16.mxu0 %v1080
        %1176 = vmatpush1.bf16.msra.mxu0 %v1079
        %1177 = vmatprep.subr.bf16.mxu0 %v1082
        %1178 = vmatpush1.bf16.msra.mxu0 %v1081
        %1179 = vmatprep.subr.bf16.mxu0 %v1084
        %1180 = vmatpush1.bf16.msra.mxu0 %v1083
        %1181 = vmatprep.subr.bf16.mxu0 %v1086
        %1182 = vmatpush1.bf16.msra.mxu0 %v1085
        %1183 = vmatprep.subr.bf16.mxu0 %v1088
        %1184 = vmatpush1.bf16.msra.mxu0 %v1087
        %1185 = vmatprep.subr.bf16.mxu0 %v1090
        %1186 = vmatpush1.bf16.msra.mxu0 %v1089
        %1187 = vmatprep.subr.bf16.mxu0 %v1092
        %1188 = vmatpush1.bf16.msra.mxu0 %v1091
        %1189 = vmatprep.subr.bf16.mxu0 %v1094
        %1190 = vmatpush1.bf16.msra.mxu0 %v1093
        %1191 = vmatprep.subr.bf16.mxu0 %v1096
        %1192 = vmatpush1.bf16.msra.mxu0 %v1095
        %1193 = vmatprep.subr.bf16.mxu0 %v1098
        %1194 = vmatpush1.bf16.msra.mxu0 %v1097
        %1195 = vmatprep.subr.bf16.mxu0 %v1100
        %1196 = vmatpush1.bf16.msra.mxu0 %v1099
        %1197 = vmatprep.subr.bf16.mxu0 %v1102
        %1198 = vmatpush1.bf16.msra.mxu0 %v1101
        %1199 = vmatprep.mubr.bf16.mxu0 %v832
        %1200 = vmatmul.mubr.bf16.gmra.mrb[0].mxu0 %v831
        %v1201 = vpop.f32.mrb[0].mxu0
        %v1202 = vadd.f32 0.0, %v1201
        %v1203 = vpop.f32.mrb[0].mxu0
        %v1204 = vadd.f32 0.0, %v1203
        %v1205 = vpop.f32.mrb[0].mxu0
        %v1206 = vadd.f32 0.0, %v1205
        %v1207 = vpop.f32.mrb[0].mxu0
        %v1208 = vadd.f32 0.0, %v1207
        %1209 = vmatprep.mubr.bf16.mxu0 %v835
        %1210 = vmatmul.mubr.bf16.gmra.mrb[0].mxu0 %v834
        %v1211 = vpop.f32.mrb[0].mxu0
        %v1212 = vadd.f32 0.0, %v1211
        %v1213 = vpop.f32.mrb[0].mxu0
        %v1214 = vadd.f32 0.0, %v1213
        %v1215 = vpop.f32.mrb[0].mxu0
        %v1216 = vadd.f32 0.0, %v1215
        %v1217 = vpop.f32.mrb[0].mxu0
        %v1218 = vadd.f32 0.0, %v1217
        %1219 = vmatprep.mubr.bf16.mxu0 %v838
        %1220 = vmatmul.mubr.bf16.gmra.mrb[0].mxu0 %v837
        %v1221 = vpop.f32.mrb[0].mxu0
        %v1222 = vadd.f32 0.0, %v1221
        %v1223 = vpop.f32.mrb[0].mxu0
        %v1224 = vadd.f32 0.0, %v1223
        %v1225 = vpop.f32.mrb[0].mxu0
        %v1226 = vadd.f32 0.0, %v1225
        %v1227 = vpop.f32.mrb[0].mxu0
        %v1228 = vadd.f32 0.0, %v1227
        %1229 = vmatprep.mubr.bf16.mxu0 %v841
        %1230 = vmatmul.mubr.bf16.gmra.mrb[0].mxu0 %v840
        %v1231 = vpop.f32.mrb[0].mxu0
        %v1232 = vadd.f32 0.0, %v1231
        %v1233 = vpop.f32.mrb[0].mxu0
        %v1234 = vadd.f32 0.0, %v1233
        %v1235 = vpop.f32.mrb[0].mxu0
        %v1236 = vadd.f32 0.0, %v1235
        %v1237 = vpop.f32.mrb[0].mxu0
        %v1238 = vadd.f32 0.0, %v1237
        %1239 = vmatprep.mubr.bf16.mxu0 %v844
        %1240 = vmatmul.mubr.bf16.gmra.mrb[0].mxu0 %v843
        %v1241 = vpop.f32.mrb[0].mxu0
        %v1242 = vadd.f32 0.0, %v1241
        %v1243 = vpop.f32.mrb[0].mxu0
        %v1244 = vadd.f32 0.0, %v1243
        %v1245 = vpop.f32.mrb[0].mxu0
        %v1246 = vadd.f32 0.0, %v1245
        %v1247 = vpop.f32.mrb[0].mxu0
        %v1248 = vadd.f32 0.0, %v1247
        %1249 = vmatprep.mubr.bf16.mxu0 %v847
        %1250 = vmatmul.mubr.bf16.gmra.mrb[0].mxu0 %v846
        %v1251 = vpop.f32.mrb[0].mxu0
        %v1252 = vadd.f32 0.0, %v1251
        %v1253 = vpop.f32.mrb[0].mxu0
        %v1254 = vadd.f32 0.0, %v1253
        %v1255 = vpop.f32.mrb[0].mxu0
        %v1256 = vadd.f32 0.0, %v1255
        %v1257 = vpop.f32.mrb[0].mxu0
        %v1258 = vadd.f32 0.0, %v1257
        %1259 = vmatprep.mubr.bf16.mxu0 %v850
        %1260 = vmatmul.mubr.bf16.gmra.mrb[0].mxu0 %v849
        %v1261 = vpop.f32.mrb[0].mxu0
        %v1262 = vadd.f32 0.0, %v1261
        %v1263 = vpop.f32.mrb[0].mxu0
        %v1264 = vadd.f32 0.0, %v1263
        %v1265 = vpop.f32.mrb[0].mxu0
        %v1266 = vadd.f32 0.0, %v1265
        %v1267 = vpop.f32.mrb[0].mxu0
        %v1268 = vadd.f32 0.0, %v1267
        %1269 = vmatprep.mubr.bf16.mxu0 %v853
        %1270 = vmatmul.mubr.bf16.gmra.mrb[0].mxu0 %v852
        %v1271 = vpop.f32.mrb[0].mxu0
        %v1272 = vadd.f32 0.0, %v1271
        %v1273 = vpop.f32.mrb[0].mxu0
        %v1274 = vadd.f32 0.0, %v1273
        %v1275 = vpop.f32.mrb[0].mxu0
        %v1276 = vadd.f32 0.0, %v1275
        %v1277 = vpop.f32.mrb[0].mxu0
        %v1278 = vadd.f32 0.0, %v1277
        %1279 = vmatprep.mubr.bf16.mxu0 %v856
        %1280 = vmatmul.mubr.bf16.gmra.mrb[0].mxu0 %v855
        %v1281 = vpop.f32.mrb[0].mxu0
        %v1282 = vadd.f32 0.0, %v1281
        %v1283 = vpop.f32.mrb[0].mxu0
        %v1284 = vadd.f32 0.0, %v1283
        %v1285 = vpop.f32.mrb[0].mxu0
        %v1286 = vadd.f32 0.0, %v1285
        %v1287 = vpop.f32.mrb[0].mxu0
        %v1288 = vadd.f32 0.0, %v1287
        %1289 = vmatprep.mubr.bf16.mxu0 %v859
        %1290 = vmatmul.mubr.bf16.gmra.mrb[0].mxu0 %v858
        %v1291 = vpop.f32.mrb[0].mxu0
        %v1292 = vadd.f32 0.0, %v1291
        %v1293 = vpop.f32.mrb[0].mxu0
        %v1294 = vadd.f32 0.0, %v1293
        %v1295 = vpop.f32.mrb[0].mxu0
        %v1296 = vadd.f32 0.0, %v1295
        %v1297 = vpop.f32.mrb[0].mxu0
        %v1298 = vadd.f32 0.0, %v1297
        %1299 = vmatprep.mubr.bf16.mxu0 %v862
        %1300 = vmatmul.mubr.bf16.gmra.mrb[0].mxu0 %v861
        %v1301 = vpop.f32.mrb[0].mxu0
        %v1302 = vadd.f32 0.0, %v1301
        %v1303 = vpop.f32.mrb[0].mxu0
        %v1304 = vadd.f32 0.0, %v1303
        %v1305 = vpop.f32.mrb[0].mxu0
        %v1306 = vadd.f32 0.0, %v1305
        %v1307 = vpop.f32.mrb[0].mxu0
        %v1308 = vadd.f32 0.0, %v1307
        %1309 = vmatprep.mubr.bf16.mxu0 %v865
        %1310 = vmatmul.mubr.bf16.gmra.mrb[0].mxu0 %v864
        %v1311 = vpop.f32.mrb[0].mxu0
        %v1312 = vadd.f32 0.0, %v1311
        %v1313 = vpop.f32.mrb[0].mxu0
        %v1314 = vadd.f32 0.0, %v1313
        %v1315 = vpop.f32.mrb[0].mxu0
        %v1316 = vadd.f32 0.0, %v1315
        %v1317 = vpop.f32.mrb[0].mxu0
        %v1318 = vadd.f32 0.0, %v1317
        %1319 = vmatprep.mubr.bf16.mxu0 %v868
        %1320 = vmatmul.mubr.bf16.gmra.mrb[0].mxu0 %v867
        %v1321 = vpop.f32.mrb[0].mxu0
        %v1322 = vadd.f32 0.0, %v1321
        %v1323 = vpop.f32.mrb[0].mxu0
        %v1324 = vadd.f32 0.0, %v1323
        %v1325 = vpop.f32.mrb[0].mxu0
        %v1326 = vadd.f32 0.0, %v1325
        %v1327 = vpop.f32.mrb[0].mxu0
        %v1328 = vadd.f32 0.0, %v1327
        %1329 = vmatprep.mubr.bf16.mxu0 %v871
        %1330 = vmatmul.mubr.bf16.gmra.mrb[0].mxu0 %v870
        %v1331 = vpop.f32.mrb[0].mxu0
        %v1332 = vadd.f32 0.0, %v1331
        %v1333 = vpop.f32.mrb[0].mxu0
        %v1334 = vadd.f32 0.0, %v1333
        %v1335 = vpop.f32.mrb[0].mxu0
        %v1336 = vadd.f32 0.0, %v1335
        %v1337 = vpop.f32.mrb[0].mxu0
        %v1338 = vadd.f32 0.0, %v1337
        %1339 = vmatprep.mubr.bf16.mxu0 %v874
        %1340 = vmatmul.mubr.bf16.gmra.mrb[0].mxu0 %v873
        %v1341 = vpop.f32.mrb[0].mxu0
        %v1342 = vadd.f32 0.0, %v1341
        %v1343 = vpop.f32.mrb[0].mxu0
        %v1344 = vadd.f32 0.0, %v1343
        %v1345 = vpop.f32.mrb[0].mxu0
        %v1346 = vadd.f32 0.0, %v1345
        %v1347 = vpop.f32.mrb[0].mxu0
        %v1348 = vadd.f32 0.0, %v1347
        %1349 = vmatprep.mubr.bf16.mxu0 %v877
        %1350 = vmatmul.mubr.bf16.gmra.mrb[0].mxu0 %v876
        %v1351 = vpop.f32.mrb[0].mxu0
        %v1352 = vadd.f32 0.0, %v1351
        %v1353 = vpop.f32.mrb[0].mxu0
        %v1354 = vadd.f32 0.0, %v1353
        %v1355 = vpop.f32.mrb[0].mxu0
        %v1356 = vadd.f32 0.0, %v1355
        %v1357 = vpop.f32.mrb[0].mxu0
        %v1358 = vadd.f32 0.0, %v1357
        %1359 = vdwg.mxu0
        %1360 = vmatprep.subr.bf16.mxu0 %v1104
        %1361 = vmatpush1.bf16.msra.mxu0 %v1103
        %1362 = vmatprep.subr.bf16.mxu0 %v1106
        %1363 = vmatpush1.bf16.msra.mxu0 %v1105
        %1364 = vmatprep.subr.bf16.mxu0 %v1108
        %1365 = vmatpush1.bf16.msra.mxu0 %v1107
        %1366 = vmatprep.subr.bf16.mxu0 %v1110
        %1367 = vmatpush1.bf16.msra.mxu0 %v1109
        %1368 = vmatprep.subr.bf16.mxu0 %v1112
        %1369 = vmatpush1.bf16.msra.mxu0 %v1111
        %1370 = vmatprep.subr.bf16.mxu0 %v1114
        %1371 = vmatpush1.bf16.msra.mxu0 %v1113
        %1372 = vmatprep.subr.bf16.mxu0 %v1116
        %1373 = vmatpush1.bf16.msra.mxu0 %v1115
        %1374 = vmatprep.subr.bf16.mxu0 %v1118
        %1375 = vmatpush1.bf16.msra.mxu0 %v1117
        %1376 = vmatprep.subr.bf16.mxu0 0
        %1377 = vmatpush1.bf16.msra.mxu0 0
        %1378 = vmatprep.subr.bf16.mxu0 0
        %1379 = vmatpush1.bf16.msra.mxu0 0
        %1380 = vmatprep.subr.bf16.mxu0 0
        %1381 = vmatpush1.bf16.msra.mxu0 0
        %1382 = vmatprep.subr.bf16.mxu0 0
        %1383 = vmatpush1.bf16.msra.mxu0 0
        %1384 = vmatprep.subr.bf16.mxu0 0
        %1385 = vmatpush1.bf16.msra.mxu0 0
        %1386 = vmatprep.subr.bf16.mxu0 0
        %1387 = vmatpush1.bf16.msra.mxu0 0
        %1388 = vmatprep.subr.bf16.mxu0 0
        %1389 = vmatpush1.bf16.msra.mxu0 0
        %1390 = vmatprep.subr.bf16.mxu0 0
        %1391 = vmatpush1.bf16.msra.mxu0 0
        %1392 = vmatprep.mubr.bf16.mxu0 0
        %1393 = vmatmul.mubr.bf16.gmra.mrb[0].mxu0 %v833
        %v1394 = vpop.f32.mrb[0].mxu0
        %v1395 = vadd.f32 %v1202, %v1394
        %v1396 = vpop.f32.mrb[0].mxu0
        %v1397 = vadd.f32 %v1204, %v1396
        %v1398 = vpop.f32.mrb[0].mxu0
        %v1399 = vadd.f32 %v1206, %v1398
        %v1400 = vpop.f32.mrb[0].mxu0
        %v1401 = vadd.f32 %v1208, %v1400
        %1402 = vmatprep.mubr.bf16.mxu0 0
        %1403 = vmatmul.mubr.bf16.gmra.mrb[0].mxu0 %v836
        %v1404 = vpop.f32.mrb[0].mxu0
        %v1405 = vadd.f32 %v1212, %v1404
        %v1406 = vpop.f32.mrb[0].mxu0
        %v1407 = vadd.f32 %v1214, %v1406
        %v1408 = vpop.f32.mrb[0].mxu0
        %v1409 = vadd.f32 %v1216, %v1408
        %v1410 = vpop.f32.mrb[0].mxu0
        %v1411 = vadd.f32 %v1218, %v1410
        %1412 = vmatprep.mubr.bf16.mxu0 0
        %1413 = vmatmul.mubr.bf16.gmra.mrb[0].mxu0 %v839
        %v1414 = vpop.f32.mrb[0].mxu0
        %v1415 = vadd.f32 %v1222, %v1414
        %v1416 = vpop.f32.mrb[0].mxu0
        %v1417 = vadd.f32 %v1224, %v1416
        %v1418 = vpop.f32.mrb[0].mxu0
        %v1419 = vadd.f32 %v1226, %v1418
        %v1420 = vpop.f32.mrb[0].mxu0
        %v1421 = vadd.f32 %v1228, %v1420
        %1422 = vmatprep.mubr.bf16.mxu0 0
        %1423 = vmatmul.mubr.bf16.gmra.mrb[0].mxu0 %v842
        %v1424 = vpop.f32.mrb[0].mxu0
        %v1425 = vadd.f32 %v1232, %v1424
        %v1426 = vpop.f32.mrb[0].mxu0
        %v1427 = vadd.f32 %v1234, %v1426
        %v1428 = vpop.f32.mrb[0].mxu0
        %v1429 = vadd.f32 %v1236, %v1428
        %v1430 = vpop.f32.mrb[0].mxu0
        %v1431 = vadd.f32 %v1238, %v1430
        %1432 = vmatprep.mubr.bf16.mxu0 0
        %1433 = vmatmul.mubr.bf16.gmra.mrb[0].mxu0 %v845
        %v1434 = vpop.f32.mrb[0].mxu0
        %v1435 = vadd.f32 %v1242, %v1434
        %v1436 = vpop.f32.mrb[0].mxu0
        %v1437 = vadd.f32 %v1244, %v1436
        %v1438 = vpop.f32.mrb[0].mxu0
        %v1439 = vadd.f32 %v1246, %v1438
        %v1440 = vpop.f32.mrb[0].mxu0
        %v1441 = vadd.f32 %v1248, %v1440
        %1442 = vmatprep.mubr.bf16.mxu0 0
        %1443 = vmatmul.mubr.bf16.gmra.mrb[0].mxu0 %v848
        %v1444 = vpop.f32.mrb[0].mxu0
        %v1445 = vadd.f32 %v1252, %v1444
        %v1446 = vpop.f32.mrb[0].mxu0
        %v1447 = vadd.f32 %v1254, %v1446
        %v1448 = vpop.f32.mrb[0].mxu0
        %v1449 = vadd.f32 %v1256, %v1448
        %v1450 = vpop.f32.mrb[0].mxu0
        %v1451 = vadd.f32 %v1258, %v1450
        %1452 = vmatprep.mubr.bf16.mxu0 0
        %1453 = vmatmul.mubr.bf16.gmra.mrb[0].mxu0 %v851
        %v1454 = vpop.f32.mrb[0].mxu0
        %v1455 = vadd.f32 %v1262, %v1454
        %v1456 = vpop.f32.mrb[0].mxu0
        %v1457 = vadd.f32 %v1264, %v1456
        %v1458 = vpop.f32.mrb[0].mxu0
        %v1459 = vadd.f32 %v1266, %v1458
        %v1460 = vpop.f32.mrb[0].mxu0
        %v1461 = vadd.f32 %v1268, %v1460
        %1462 = vmatprep.mubr.bf16.mxu0 0
        %1463 = vmatmul.mubr.bf16.gmra.mrb[0].mxu0 %v854
        %v1464 = vpop.f32.mrb[0].mxu0
        %v1465 = vadd.f32 %v1272, %v1464
        %v1466 = vpop.f32.mrb[0].mxu0
        %v1467 = vadd.f32 %v1274, %v1466
        %v1468 = vpop.f32.mrb[0].mxu0
        %v1469 = vadd.f32 %v1276, %v1468
        %v1470 = vpop.f32.mrb[0].mxu0
        %v1471 = vadd.f32 %v1278, %v1470
        %1472 = vmatprep.mubr.bf16.mxu0 0
        %1473 = vmatmul.mubr.bf16.gmra.mrb[0].mxu0 %v857
        %v1474 = vpop.f32.mrb[0].mxu0
        %v1475 = vadd.f32 %v1282, %v1474
        %v1476 = vpop.f32.mrb[0].mxu0
        %v1477 = vadd.f32 %v1284, %v1476
        %v1478 = vpop.f32.mrb[0].mxu0
        %v1479 = vadd.f32 %v1286, %v1478
        %v1480 = vpop.f32.mrb[0].mxu0
        %v1481 = vadd.f32 %v1288, %v1480
        %1482 = vmatprep.mubr.bf16.mxu0 0
        %1483 = vmatmul.mubr.bf16.gmra.mrb[0].mxu0 %v860
        %v1484 = vpop.f32.mrb[0].mxu0
        %v1485 = vadd.f32 %v1292, %v1484
        %v1486 = vpop.f32.mrb[0].mxu0
        %v1487 = vadd.f32 %v1294, %v1486
        %v1488 = vpop.f32.mrb[0].mxu0
        %v1489 = vadd.f32 %v1296, %v1488
        %v1490 = vpop.f32.mrb[0].mxu0
        %v1491 = vadd.f32 %v1298, %v1490
        %1492 = vmatprep.mubr.bf16.mxu0 0
        %1493 = vmatmul.mubr.bf16.gmra.mrb[0].mxu0 %v863
        %v1494 = vpop.f32.mrb[0].mxu0
        %v1495 = vadd.f32 %v1302, %v1494
        %v1496 = vpop.f32.mrb[0].mxu0
        %v1497 = vadd.f32 %v1304, %v1496
        %v1498 = vpop.f32.mrb[0].mxu0
        %v1499 = vadd.f32 %v1306, %v1498
        %v1500 = vpop.f32.mrb[0].mxu0
        %v1501 = vadd.f32 %v1308, %v1500
        %1502 = vmatprep.mubr.bf16.mxu0 0
        %1503 = vmatmul.mubr.bf16.gmra.mrb[0].mxu0 %v866
        %v1504 = vpop.f32.mrb[0].mxu0
        %v1505 = vadd.f32 %v1312, %v1504
        %v1506 = vpop.f32.mrb[0].mxu0
        %v1507 = vadd.f32 %v1314, %v1506
        %v1508 = vpop.f32.mrb[0].mxu0
        %v1509 = vadd.f32 %v1316, %v1508
        %v1510 = vpop.f32.mrb[0].mxu0
        %v1511 = vadd.f32 %v1318, %v1510
        %1512 = vmatprep.mubr.bf16.mxu0 0
        %1513 = vmatmul.mubr.bf16.gmra.mrb[0].mxu0 %v869
        %v1514 = vpop.f32.mrb[0].mxu0
        %v1515 = vadd.f32 %v1322, %v1514
        %v1516 = vpop.f32.mrb[0].mxu0
        %v1517 = vadd.f32 %v1324, %v1516
        %v1518 = vpop.f32.mrb[0].mxu0
        %v1519 = vadd.f32 %v1326, %v1518
        %v1520 = vpop.f32.mrb[0].mxu0
        %v1521 = vadd.f32 %v1328, %v1520
        %1522 = vmatprep.mubr.bf16.mxu0 0
        %1523 = vmatmul.mubr.bf16.gmra.mrb[0].mxu0 %v872
        %v1524 = vpop.f32.mrb[0].mxu0
        %v1525 = vadd.f32 %v1332, %v1524
        %v1526 = vpop.f32.mrb[0].mxu0
        %v1527 = vadd.f32 %v1334, %v1526
        %v1528 = vpop.f32.mrb[0].mxu0
        %v1529 = vadd.f32 %v1336, %v1528
        %v1530 = vpop.f32.mrb[0].mxu0
        %v1531 = vadd.f32 %v1338, %v1530
        %1532 = vmatprep.mubr.bf16.mxu0 0
        %1533 = vmatmul.mubr.bf16.gmra.mrb[0].mxu0 %v875
        %v1534 = vpop.f32.mrb[0].mxu0
        %v1535 = vadd.f32 %v1342, %v1534
        %v1536 = vpop.f32.mrb[0].mxu0
        %v1537 = vadd.f32 %v1344, %v1536
        %v1538 = vpop.f32.mrb[0].mxu0
        %v1539 = vadd.f32 %v1346, %v1538
        %v1540 = vpop.f32.mrb[0].mxu0
        %v1541 = vadd.f32 %v1348, %v1540
        %1542 = vmatprep.mubr.bf16.mxu0 0
        %1543 = vmatmul.mubr.bf16.gmra.mrb[0].mxu0 %v878
        %v1544 = vpop.f32.mrb[0].mxu0
        %v1545 = vadd.f32 %v1352, %v1544
        %v1546 = vpop.f32.mrb[0].mxu0
        %v1547 = vadd.f32 %v1354, %v1546
        %v1548 = vpop.f32.mrb[0].mxu0
        %v1549 = vadd.f32 %v1356, %v1548
        %v1550 = vpop.f32.mrb[0].mxu0
        %v1551 = vadd.f32 %v1358, %v1550
        %1552 = vdwg.mxu0
        %v1553 = vadd.f32 %v495, %v1395
        %v1554 = vadd.f32 %v496, %v1397
        %v1555 = vadd.f32 %v497, %v1399
        %v1556 = vadd.f32 %v498, %v1401
        %v1557 = vadd.f32 %v499, %v1405
        %v1558 = vadd.f32 %v500, %v1407
        %v1559 = vadd.f32 %v501, %v1409
        %v1560 = vadd.f32 %v502, %v1411
        %v1561 = vadd.f32 %v503, %v1415
        %v1562 = vadd.f32 %v504, %v1417
        %v1563 = vadd.f32 %v505, %v1419
        %v1564 = vadd.f32 %v506, %v1421
        %v1565 = vadd.f32 %v507, %v1425
        %v1566 = vadd.f32 %v508, %v1427
        %v1567 = vadd.f32 %v509, %v1429
        %v1568 = vadd.f32 %v510, %v1431
        %v1569 = vadd.f32 %v511, %v1435
        %v1570 = vadd.f32 %v512, %v1437
        %v1571 = vadd.f32 %v513, %v1439
        %v1572 = vadd.f32 %v514, %v1441
        %v1573 = vadd.f32 %v515, %v1445
        %v1574 = vadd.f32 %v516, %v1447
        %v1575 = vadd.f32 %v517, %v1449
        %v1576 = vadd.f32 %v518, %v1451
        %v1577 = vadd.f32 %v519, %v1455
        %v1578 = vadd.f32 %v520, %v1457
        %v1579 = vadd.f32 %v521, %v1459
        %v1580 = vadd.f32 %v522, %v1461
        %v1581 = vadd.f32 %v523, %v1465
        %v1582 = vadd.f32 %v524, %v1467
        %v1583 = vadd.f32 %v525, %v1469
        %v1584 = vadd.f32 %v526, %v1471
        %v1585 = vadd.f32 %v527, %v1475
        %v1586 = vadd.f32 %v528, %v1477
        %v1587 = vadd.f32 %v529, %v1479
        %v1588 = vadd.f32 %v530, %v1481
        %v1589 = vadd.f32 %v531, %v1485
        %v1590 = vadd.f32 %v532, %v1487
        %v1591 = vadd.f32 %v533, %v1489
        %v1592 = vadd.f32 %v534, %v1491
        %v1593 = vadd.f32 %v535, %v1495
        %v1594 = vadd.f32 %v536, %v1497
        %v1595 = vadd.f32 %v537, %v1499
        %v1596 = vadd.f32 %v538, %v1501
        %v1597 = vadd.f32 %v539, %v1505
        %v1598 = vadd.f32 %v540, %v1507
        %v1599 = vadd.f32 %v541, %v1509
        %v1600 = vadd.f32 %v542, %v1511
        %v1601 = vadd.f32 %v543, %v1515
        %v1602 = vadd.f32 %v544, %v1517
        %v1603 = vadd.f32 %v545, %v1519
        %v1604 = vadd.f32 %v546, %v1521
        %v1605 = vadd.f32 %v547, %v1525
        %v1606 = vadd.f32 %v548, %v1527
        %v1607 = vadd.f32 %v549, %v1529
        %v1608 = vadd.f32 %v550, %v1531
        %v1609 = vadd.f32 %v551, %v1535
        %v1610 = vadd.f32 %v552, %v1537
        %v1611 = vadd.f32 %v553, %v1539
        %v1612 = vadd.f32 %v554, %v1541
        %v1613 = vadd.f32 %v555, %v1545
        %v1614 = vadd.f32 %v556, %v1547
        %v1615 = vadd.f32 %v557, %v1549
        %v1616 = vadd.f32 %v558, %v1551
        %1617 = vst [vmem:[#allocation2] sm:$0xff] %v1553
        %1618 = vst [vmem:[#allocation2 + $0x8] sm:$0xff] %v1554
        %1619 = vst [vmem:[#allocation2 + $0x10] sm:$0xff] %v1555
        %1620 = vst [vmem:[#allocation2 + $0x18] sm:$0xff] %v1556
        %1621 = vst [vmem:[#allocation2 + $0x20] sm:$0xff] %v1557
        %1622 = vst [vmem:[#allocation2 + $0x28] sm:$0xff] %v1558
        %1623 = vst [vmem:[#allocation2 + $0x30] sm:$0xff] %v1559
        %1624 = vst [vmem:[#allocation2 + $0x38] sm:$0xff] %v1560
        %1625 = vst [vmem:[#allocation2 + $0x40] sm:$0xff] %v1561
        %1626 = vst [vmem:[#allocation2 + $0x48] sm:$0xff] %v1562
        %1627 = vst [vmem:[#allocation2 + $0x50] sm:$0xff] %v1563
        %1628 = vst [vmem:[#allocation2 + $0x58] sm:$0xff] %v1564
        %1629 = vst [vmem:[#allocation2 + $0x60] sm:$0xff] %v1565
        %1630 = vst [vmem:[#allocation2 + $0x68] sm:$0xff] %v1566
        %1631 = vst [vmem:[#allocation2 + $0x70] sm:$0xff] %v1567
        %1632 = vst [vmem:[#allocation2 + $0x78] sm:$0xff] %v1568
        %1633 = vst [vmem:[#allocation2 + $0x80] sm:$0xff] %v1569
        %1634 = vst [vmem:[#allocation2 + $0x88] sm:$0xff] %v1570
        %1635 = vst [vmem:[#allocation2 + $0x90] sm:$0xff] %v1571
        %1636 = vst [vmem:[#allocation2 + $0x98] sm:$0xff] %v1572
        %1637 = vst [vmem:[#allocation2 + $0xa0] sm:$0xff] %v1573
        %1638 = vst [vmem:[#allocation2 + $0xa8] sm:$0xff] %v1574
        %1639 = vst [vmem:[#allocation2 + $0xb0] sm:$0xff] %v1575
        %1640 = vst [vmem:[#allocation2 + $0xb8] sm:$0xff] %v1576
        %1641 = vst [vmem:[#allocation2 + $0xc0] sm:$0xff] %v1577
        %1642 = vst [vmem:[#allocation2 + $0xc8] sm:$0xff] %v1578
        %1643 = vst [vmem:[#allocation2 + $0xd0] sm:$0xff] %v1579
        %1644 = vst [vmem:[#allocation2 + $0xd8] sm:$0xff] %v1580
        %1645 = vst [vmem:[#allocation2 + $0xe0] sm:$0xff] %v1581
        %1646 = vst [vmem:[#allocation2 + $0xe8] sm:$0xff] %v1582
        %1647 = vst [vmem:[#allocation2 + $0xf0] sm:$0xff] %v1583
        %1648 = vst [vmem:[#allocation2 + $0xf8] sm:$0xff] %v1584
        %1649 = vst [vmem:[#allocation2 + $0x100] sm:$0xff] %v1585
        %1650 = vst [vmem:[#allocation2 + $0x108] sm:$0xff] %v1586
        %1651 = vst [vmem:[#allocation2 + $0x110] sm:$0xff] %v1587
        %1652 = vst [vmem:[#allocation2 + $0x118] sm:$0xff] %v1588
        %1653 = vst [vmem:[#allocation2 + $0x120] sm:$0xff] %v1589
        %1654 = vst [vmem:[#allocation2 + $0x128] sm:$0xff] %v1590
        %1655 = vst [vmem:[#allocation2 + $0x130] sm:$0xff] %v1591
        %1656 = vst [vmem:[#allocation2 + $0x138] sm:$0xff] %v1592
        %1657 = vst [vmem:[#allocation2 + $0x140] sm:$0xff] %v1593
        %1658 = vst [vmem:[#allocation2 + $0x148] sm:$0xff] %v1594
        %1659 = vst [vmem:[#allocation2 + $0x150] sm:$0xff] %v1595
        %1660 = vst [vmem:[#allocation2 + $0x158] sm:$0xff] %v1596
        %1661 = vst [vmem:[#allocation2 + $0x160] sm:$0xff] %v1597
        %1662 = vst [vmem:[#allocation2 + $0x168] sm:$0xff] %v1598
        %1663 = vst [vmem:[#allocation2 + $0x170] sm:$0xff] %v1599
        %1664 = vst [vmem:[#allocation2 + $0x178] sm:$0xff] %v1600
        %1665 = vst [vmem:[#allocation2 + $0x180] sm:$0xff] %v1601
        %1666 = vst [vmem:[#allocation2 + $0x188] sm:$0xff] %v1602
        %1667 = vst [vmem:[#allocation2 + $0x190] sm:$0xff] %v1603
        %1668 = vst [vmem:[#allocation2 + $0x198] sm:$0xff] %v1604
        %1669 = vst [vmem:[#allocation2 + $0x1a0] sm:$0xff] %v1605
        %1670 = vst [vmem:[#allocation2 + $0x1a8] sm:$0xff] %v1606
        %1671 = vst [vmem:[#allocation2 + $0x1b0] sm:$0xff] %v1607
        %1672 = vst [vmem:[#allocation2 + $0x1b8] sm:$0xff] %v1608
        %1673 = vst [vmem:[#allocation2 + $0x1c0] sm:$0xff] %v1609
        %1674 = vst [vmem:[#allocation2 + $0x1c8] sm:$0xff] %v1610
        %1675 = vst [vmem:[#allocation2 + $0x1d0] sm:$0xff] %v1611
        %1676 = vst [vmem:[#allocation2 + $0x1d8] sm:$0xff] %v1612
        %1677 = vst [vmem:[#allocation2 + $0x1e0] sm:$0xff] %v1613
        %1678 = vst [vmem:[#allocation2 + $0x1e8] sm:$0xff] %v1614
        %1679 = vst [vmem:[#allocation2 + $0x1f0] sm:$0xff] %v1615
        %1680 = vst [vmem:[#allocation2 + $0x1f8] sm:$0xff] %v1616
        %p1681 = scmp.eq.s32.totalorder %s21, 2
        // Predicated region
        $region63: #{matmul_bias_relu.1} parent=53 // pred_check
          %p1682 = pneg %p1681
        $region64: #{matmul_bias_relu.1} parent=53 // pred_check_branch
          %1684 = sbr.rel (%p1682) target = $region66
        $region65: #{matmul_bias_relu.1} parent=53 // pred_region
          %v1685 = vld [vmem:[#allocation2] sm:$0xff]
          %v1686 = vld [vmem:[#allocation2 + $0x8] sm:$0xff]
          %v1687 = vld [vmem:[#allocation2 + $0x10] sm:$0xff]
          %v1688 = vld [vmem:[#allocation2 + $0x18] sm:$0xff]
          %v1689 = vld [vmem:[#allocation2 + $0x20] sm:$0xff]
          %v1690 = vld [vmem:[#allocation2 + $0x28] sm:$0xff]
          %v1691 = vld [vmem:[#allocation2 + $0x30] sm:$0xff]
          %v1692 = vld [vmem:[#allocation2 + $0x38] sm:$0xff]
          %v1693 = vld [vmem:[#allocation2 + $0x40] sm:$0xff]
          %v1694 = vld [vmem:[#allocation2 + $0x48] sm:$0xff]
          %v1695 = vld [vmem:[#allocation2 + $0x50] sm:$0xff]
          %v1696 = vld [vmem:[#allocation2 + $0x58] sm:$0xff]
          %v1697 = vld [vmem:[#allocation2 + $0x60] sm:$0xff]
          %v1698 = vld [vmem:[#allocation2 + $0x68] sm:$0xff]
          %v1699 = vld [vmem:[#allocation2 + $0x70] sm:$0xff]
          %v1700 = vld [vmem:[#allocation2 + $0x78] sm:$0xff]
          %v1701 = vld [vmem:[#allocation2 + $0x80] sm:$0xff]
          %v1702 = vld [vmem:[#allocation2 + $0x88] sm:$0xff]
          %v1703 = vld [vmem:[#allocation2 + $0x90] sm:$0xff]
          %v1704 = vld [vmem:[#allocation2 + $0x98] sm:$0xff]
          %v1705 = vld [vmem:[#allocation2 + $0xa0] sm:$0xff]
          %v1706 = vld [vmem:[#allocation2 + $0xa8] sm:$0xff]
          %v1707 = vld [vmem:[#allocation2 + $0xb0] sm:$0xff]
          %v1708 = vld [vmem:[#allocation2 + $0xb8] sm:$0xff]
          %v1709 = vld [vmem:[#allocation2 + $0xc0] sm:$0xff]
          %v1710 = vld [vmem:[#allocation2 + $0xc8] sm:$0xff]
          %v1711 = vld [vmem:[#allocation2 + $0xd0] sm:$0xff]
          %v1712 = vld [vmem:[#allocation2 + $0xd8] sm:$0xff]
          %v1713 = vld [vmem:[#allocation2 + $0xe0] sm:$0xff]
          %v1714 = vld [vmem:[#allocation2 + $0xe8] sm:$0xff]
          %v1715 = vld [vmem:[#allocation2 + $0xf0] sm:$0xff]
          %v1716 = vld [vmem:[#allocation2 + $0xf8] sm:$0xff]
          %v1717 = vld [vmem:[#allocation2 + $0x100] sm:$0xff]
          %v1718 = vld [vmem:[#allocation2 + $0x108] sm:$0xff]
          %v1719 = vld [vmem:[#allocation2 + $0x110] sm:$0xff]
          %v1720 = vld [vmem:[#allocation2 + $0x118] sm:$0xff]
          %v1721 = vld [vmem:[#allocation2 + $0x120] sm:$0xff]
          %v1722 = vld [vmem:[#allocation2 + $0x128] sm:$0xff]
          %v1723 = vld [vmem:[#allocation2 + $0x130] sm:$0xff]
          %v1724 = vld [vmem:[#allocation2 + $0x138] sm:$0xff]
          %v1725 = vld [vmem:[#allocation2 + $0x140] sm:$0xff]
          %v1726 = vld [vmem:[#allocation2 + $0x148] sm:$0xff]
          %v1727 = vld [vmem:[#allocation2 + $0x150] sm:$0xff]
          %v1728 = vld [vmem:[#allocation2 + $0x158] sm:$0xff]
          %v1729 = vld [vmem:[#allocation2 + $0x160] sm:$0xff]
          %v1730 = vld [vmem:[#allocation2 + $0x168] sm:$0xff]
          %v1731 = vld [vmem:[#allocation2 + $0x170] sm:$0xff]
          %v1732 = vld [vmem:[#allocation2 + $0x178] sm:$0xff]
          %v1733 = vld [vmem:[#allocation2 + $0x180] sm:$0xff]
          %v1734 = vld [vmem:[#allocation2 + $0x188] sm:$0xff]
          %v1735 = vld [vmem:[#allocation2 + $0x190] sm:$0xff]
          %v1736 = vld [vmem:[#allocation2 + $0x198] sm:$0xff]
          %v1737 = vld [vmem:[#allocation2 + $0x1a0] sm:$0xff]
          %v1738 = vld [vmem:[#allocation2 + $0x1a8] sm:$0xff]
          %v1739 = vld [vmem:[#allocation2 + $0x1b0] sm:$0xff]
          %v1740 = vld [vmem:[#allocation2 + $0x1b8] sm:$0xff]
          %v1741 = vld [vmem:[#allocation2 + $0x1c0] sm:$0xff]
          %v1742 = vld [vmem:[#allocation2 + $0x1c8] sm:$0xff]
          %v1743 = vld [vmem:[#allocation2 + $0x1d0] sm:$0xff]
          %v1744 = vld [vmem:[#allocation2 + $0x1d8] sm:$0xff]
          %v1745 = vld [vmem:[#allocation2 + $0x1e0] sm:$0xff]
          %v1746 = vld [vmem:[#allocation2 + $0x1e8] sm:$0xff]
          %v1747 = vld [vmem:[#allocation2 + $0x1f0] sm:$0xff]
          %v1748 = vld [vmem:[#allocation2 + $0x1f8] sm:$0xff]
          %v1749 = vld [vmem:[%s412] sm:$0x3]
          %v1751 = vlaneseq
          %v1752 = vshrl.u32 %v1751, 7
          %v1753 = vsub.s32 0, %v1752
          %v1754 = vrot.slane %v1749, %v1753
          %v1755 = vlaneseq
          %v1756 = vshrl.u32 %v1755, 7
          %v1757 = vsub.s32 1, %v1756
          %v1758 = vrot.slane %v1749, %v1757
          %v1761 = vadd.f32 %v1685, %v1754
          %v1762 = vadd.f32 %v1686, %v1758
          %v1763 = vadd.f32 %v1687, %v1754
          %v1764 = vadd.f32 %v1688, %v1758
          %v1765 = vadd.f32 %v1689, %v1754
          %v1766 = vadd.f32 %v1690, %v1758
          %v1767 = vadd.f32 %v1691, %v1754
          %v1768 = vadd.f32 %v1692, %v1758
          %v1769 = vadd.f32 %v1693, %v1754
          %v1770 = vadd.f32 %v1694, %v1758
          %v1771 = vadd.f32 %v1695, %v1754
          %v1772 = vadd.f32 %v1696, %v1758
          %v1773 = vadd.f32 %v1697, %v1754
          %v1774 = vadd.f32 %v1698, %v1758
          %v1775 = vadd.f32 %v1699, %v1754
          %v1776 = vadd.f32 %v1700, %v1758
          %v1777 = vadd.f32 %v1701, %v1754
          %v1778 = vadd.f32 %v1702, %v1758
          %v1779 = vadd.f32 %v1703, %v1754
          %v1780 = vadd.f32 %v1704, %v1758
          %v1781 = vadd.f32 %v1705, %v1754
          %v1782 = vadd.f32 %v1706, %v1758
          %v1783 = vadd.f32 %v1707, %v1754
          %v1784 = vadd.f32 %v1708, %v1758
          %v1785 = vadd.f32 %v1709, %v1754
          %v1786 = vadd.f32 %v1710, %v1758
          %v1787 = vadd.f32 %v1711, %v1754
          %v1788 = vadd.f32 %v1712, %v1758
          %v1789 = vadd.f32 %v1713, %v1754
          %v1790 = vadd.f32 %v1714, %v1758
          %v1791 = vadd.f32 %v1715, %v1754
          %v1792 = vadd.f32 %v1716, %v1758
          %v1793 = vadd.f32 %v1717, %v1754
          %v1794 = vadd.f32 %v1718, %v1758
          %v1795 = vadd.f32 %v1719, %v1754
          %v1796 = vadd.f32 %v1720, %v1758
          %v1797 = vadd.f32 %v1721, %v1754
          %v1798 = vadd.f32 %v1722, %v1758
          %v1799 = vadd.f32 %v1723, %v1754
          %v1800 = vadd.f32 %v1724, %v1758
          %v1801 = vadd.f32 %v1725, %v1754
          %v1802 = vadd.f32 %v1726, %v1758
          %v1803 = vadd.f32 %v1727, %v1754
          %v1804 = vadd.f32 %v1728, %v1758
          %v1805 = vadd.f32 %v1729, %v1754
          %v1806 = vadd.f32 %v1730, %v1758
          %v1807 = vadd.f32 %v1731, %v1754
          %v1808 = vadd.f32 %v1732, %v1758
          %v1809 = vadd.f32 %v1733, %v1754
          %v1810 = vadd.f32 %v1734, %v1758
          %v1811 = vadd.f32 %v1735, %v1754
          %v1812 = vadd.f32 %v1736, %v1758
          %v1813 = vadd.f32 %v1737, %v1754
          %v1814 = vadd.f32 %v1738, %v1758
          %v1815 = vadd.f32 %v1739, %v1754
          %v1816 = vadd.f32 %v1740, %v1758
          %v1817 = vadd.f32 %v1741, %v1754
          %v1818 = vadd.f32 %v1742, %v1758
          %v1819 = vadd.f32 %v1743, %v1754
          %v1820 = vadd.f32 %v1744, %v1758
          %v1821 = vadd.f32 %v1745, %v1754
          %v1822 = vadd.f32 %v1746, %v1758
          %v1823 = vadd.f32 %v1747, %v1754
          %v1824 = vadd.f32 %v1748, %v1758
          %v1825 = vmax.f32 %v1761, 0.0
          %v1826 = vmax.f32 %v1762, 0.0
          %v1827 = vmax.f32 %v1763, 0.0
          %v1828 = vmax.f32 %v1764, 0.0
          %v1829 = vmax.f32 %v1765, 0.0
          %v1830 = vmax.f32 %v1766, 0.0
          %v1831 = vmax.f32 %v1767, 0.0
          %v1832 = vmax.f32 %v1768, 0.0
          %v1833 = vmax.f32 %v1769, 0.0
          %v1834 = vmax.f32 %v1770, 0.0
          %v1835 = vmax.f32 %v1771, 0.0
          %v1836 = vmax.f32 %v1772, 0.0
          %v1837 = vmax.f32 %v1773, 0.0
          %v1838 = vmax.f32 %v1774, 0.0
          %v1839 = vmax.f32 %v1775, 0.0
          %v1840 = vmax.f32 %v1776, 0.0
          %v1841 = vmax.f32 %v1777, 0.0
          %v1842 = vmax.f32 %v1778, 0.0
          %v1843 = vmax.f32 %v1779, 0.0
          %v1844 = vmax.f32 %v1780, 0.0
          %v1845 = vmax.f32 %v1781, 0.0
          %v1846 = vmax.f32 %v1782, 0.0
          %v1847 = vmax.f32 %v1783, 0.0
          %v1848 = vmax.f32 %v1784, 0.0
          %v1849 = vmax.f32 %v1785, 0.0
          %v1850 = vmax.f32 %v1786, 0.0
          %v1851 = vmax.f32 %v1787, 0.0
          %v1852 = vmax.f32 %v1788, 0.0
          %v1853 = vmax.f32 %v1789, 0.0
          %v1854 = vmax.f32 %v1790, 0.0
          %v1855 = vmax.f32 %v1791, 0.0
          %v1856 = vmax.f32 %v1792, 0.0
          %v1857 = vmax.f32 %v1793, 0.0
          %v1858 = vmax.f32 %v1794, 0.0
          %v1859 = vmax.f32 %v1795, 0.0
          %v1860 = vmax.f32 %v1796, 0.0
          %v1861 = vmax.f32 %v1797, 0.0
          %v1862 = vmax.f32 %v1798, 0.0
          %v1863 = vmax.f32 %v1799, 0.0
          %v1864 = vmax.f32 %v1800, 0.0
          %v1865 = vmax.f32 %v1801, 0.0
          %v1866 = vmax.f32 %v1802, 0.0
          %v1867 = vmax.f32 %v1803, 0.0
          %v1868 = vmax.f32 %v1804, 0.0
          %v1869 = vmax.f32 %v1805, 0.0
          %v1870 = vmax.f32 %v1806, 0.0
          %v1871 = vmax.f32 %v1807, 0.0
          %v1872 = vmax.f32 %v1808, 0.0
          %v1873 = vmax.f32 %v1809, 0.0
          %v1874 = vmax.f32 %v1810, 0.0
          %v1875 = vmax.f32 %v1811, 0.0
          %v1876 = vmax.f32 %v1812, 0.0
          %v1877 = vmax.f32 %v1813, 0.0
          %v1878 = vmax.f32 %v1814, 0.0
          %v1879 = vmax.f32 %v1815, 0.0
          %v1880 = vmax.f32 %v1816, 0.0
          %v1881 = vmax.f32 %v1817, 0.0
          %v1882 = vmax.f32 %v1818, 0.0
          %v1883 = vmax.f32 %v1819, 0.0
          %v1884 = vmax.f32 %v1820, 0.0
          %v1885 = vmax.f32 %v1821, 0.0
          %v1886 = vmax.f32 %v1822, 0.0
          %v1887 = vmax.f32 %v1823, 0.0
          %v1888 = vmax.f32 %v1824, 0.0
          %1889 = vst [vmem:[%s423] sm:$0xff] %v1825
          %1890 = vst [vmem:[%s423 + $0x8] sm:$0xff] %v1826
          %1891 = vst [vmem:[%s423 + $0x10] sm:$0xff] %v1827
          %1892 = vst [vmem:[%s423 + $0x18] sm:$0xff] %v1828
          %1893 = vst [vmem:[%s423 + $0x20] sm:$0xff] %v1829
          %1894 = vst [vmem:[%s423 + $0x28] sm:$0xff] %v1830
          %1895 = vst [vmem:[%s423 + $0x30] sm:$0xff] %v1831
          %1896 = vst [vmem:[%s423 + $0x38] sm:$0xff] %v1832
          %1897 = vst [vmem:[%s423 + $0x40] sm:$0xff] %v1833
          %1898 = vst [vmem:[%s423 + $0x48] sm:$0xff] %v1834
          %1899 = vst [vmem:[%s423 + $0x50] sm:$0xff] %v1835
          %1900 = vst [vmem:[%s423 + $0x58] sm:$0xff] %v1836
          %1901 = vst [vmem:[%s423 + $0x60] sm:$0xff] %v1837
          %1902 = vst [vmem:[%s423 + $0x68] sm:$0xff] %v1838
          %1903 = vst [vmem:[%s423 + $0x70] sm:$0xff] %v1839
          %1904 = vst [vmem:[%s423 + $0x78] sm:$0xff] %v1840
          %1905 = vst [vmem:[%s423 + $0x80] sm:$0xff] %v1841
          %1906 = vst [vmem:[%s423 + $0x88] sm:$0xff] %v1842
          %1907 = vst [vmem:[%s423 + $0x90] sm:$0xff] %v1843
          %1908 = vst [vmem:[%s423 + $0x98] sm:$0xff] %v1844
          %1909 = vst [vmem:[%s423 + $0xa0] sm:$0xff] %v1845
          %1910 = vst [vmem:[%s423 + $0xa8] sm:$0xff] %v1846
          %1911 = vst [vmem:[%s423 + $0xb0] sm:$0xff] %v1847
          %1912 = vst [vmem:[%s423 + $0xb8] sm:$0xff] %v1848
          %1913 = vst [vmem:[%s423 + $0xc0] sm:$0xff] %v1849
          %1914 = vst [vmem:[%s423 + $0xc8] sm:$0xff] %v1850
          %1915 = vst [vmem:[%s423 + $0xd0] sm:$0xff] %v1851
          %1916 = vst [vmem:[%s423 + $0xd8] sm:$0xff] %v1852
          %1917 = vst [vmem:[%s423 + $0xe0] sm:$0xff] %v1853
          %1918 = vst [vmem:[%s423 + $0xe8] sm:$0xff] %v1854
          %1919 = vst [vmem:[%s423 + $0xf0] sm:$0xff] %v1855
          %1920 = vst [vmem:[%s423 + $0xf8] sm:$0xff] %v1856
          %1921 = vst [vmem:[%s423 + $0x100] sm:$0xff] %v1857
          %1922 = vst [vmem:[%s423 + $0x108] sm:$0xff] %v1858
          %1923 = vst [vmem:[%s423 + $0x110] sm:$0xff] %v1859
          %1924 = vst [vmem:[%s423 + $0x118] sm:$0xff] %v1860
          %1925 = vst [vmem:[%s423 + $0x120] sm:$0xff] %v1861
          %1926 = vst [vmem:[%s423 + $0x128] sm:$0xff] %v1862
          %1927 = vst [vmem:[%s423 + $0x130] sm:$0xff] %v1863
          %1928 = vst [vmem:[%s423 + $0x138] sm:$0xff] %v1864
          %1929 = vst [vmem:[%s423 + $0x140] sm:$0xff] %v1865
          %1930 = vst [vmem:[%s423 + $0x148] sm:$0xff] %v1866
          %1931 = vst [vmem:[%s423 + $0x150] sm:$0xff] %v1867
          %1932 = vst [vmem:[%s423 + $0x158] sm:$0xff] %v1868
          %1933 = vst [vmem:[%s423 + $0x160] sm:$0xff] %v1869
          %1934 = vst [vmem:[%s423 + $0x168] sm:$0xff] %v1870
          %1935 = vst [vmem:[%s423 + $0x170] sm:$0xff] %v1871
          %1936 = vst [vmem:[%s423 + $0x178] sm:$0xff] %v1872
          %1937 = vst [vmem:[%s423 + $0x180] sm:$0xff] %v1873
          %1938 = vst [vmem:[%s423 + $0x188] sm:$0xff] %v1874
          %1939 = vst [vmem:[%s423 + $0x190] sm:$0xff] %v1875
          %1940 = vst [vmem:[%s423 + $0x198] sm:$0xff] %v1876
          %1941 = vst [vmem:[%s423 + $0x1a0] sm:$0xff] %v1877
          %1942 = vst [vmem:[%s423 + $0x1a8] sm:$0xff] %v1878
          %1943 = vst [vmem:[%s423 + $0x1b0] sm:$0xff] %v1879
          %1944 = vst [vmem:[%s423 + $0x1b8] sm:$0xff] %v1880
          %1945 = vst [vmem:[%s423 + $0x1c0] sm:$0xff] %v1881
          %1946 = vst [vmem:[%s423 + $0x1c8] sm:$0xff] %v1882
          %1947 = vst [vmem:[%s423 + $0x1d0] sm:$0xff] %v1883
          %1948 = vst [vmem:[%s423 + $0x1d8] sm:$0xff] %v1884
          %1949 = vst [vmem:[%s423 + $0x1e0] sm:$0xff] %v1885
          %1950 = vst [vmem:[%s423 + $0x1e8] sm:$0xff] %v1886
          %1951 = vst [vmem:[%s423 + $0x1f0] sm:$0xff] %v1887
          %1952 = vst [vmem:[%s423 + $0x1f8] sm:$0xff] %v1888
        $region66: #{matmul_bias_relu.1} parent=53 // pred_fallthru
          _
        %s1953 = smul.u32 32, %s19
        %s1954 = smul.u32 2, %s20
        %p1955 = scmp.lt.s32.totalorder %s1953, 95
        %s1956 = scalar_select %p1955, %s1953, 95
        %p1957 = scmp.lt.s32.totalorder %s1954, 1
        %s1958 = scalar_select %p1957, %s1954, 1
        %s1959 = smul.addr %s1956, 2
        %s1960 = sadd.s32 %s1958, %s1959
        %s1961 = smul.addr %s1960, 8
        %s1962 = scalar_lea.vmem %s3, %s1961
        // Predicated region
        $region67: #{matmul_bias_relu.1} parent=53 // pred_check
          %p1963 = pneg %p135
        $region68: #{matmul_bias_relu.1} parent=53 // pred_check_branch
          %1965 = sbr.rel (%p1963) target = $region70
        $region69: #{matmul_bias_relu.1} parent=53 // pred_region
          %s1966 = smul.u32 32, %s19
          %s1967 = smul.u32 2, %s20
        $region70: #{matmul_bias_relu.1} parent=53 // pred_fallthru
          _
      $region54: #{matmul_bias_relu.1} parent=5 // pred_fallthru
        _
      %p1968 = scmp.le.s32.totalorder 2, %s9
      // Predicated region
      $region71: #{matmul_bias_relu.1} parent=5 // pred_check
        %p1969 = pneg %p1968
      $region72: #{matmul_bias_relu.1} parent=5 // pred_check_branch
        %1971 = sbr.rel (%p1969) target = $region74
      $region73: #{matmul_bias_relu.1} parent=5 // pred_region
        %s1972 = ssub.s32 %s9, 2
        // Predicated region
        $region75: #{matmul_bias_relu.1} parent=73 // pred_check
          %p1973 = pneg %p141
        $region76: #{matmul_bias_relu.1} parent=73 // pred_check_branch
          %1975 = sbr.rel (%p1973) target = $region78
        $region77: #{matmul_bias_relu.1} parent=73 // pred_region
          %s1976 = smul.u32 32, %s22
          %s1977 = smul.u32 2, %s23
          %p1978 = scmp.lt.s32.totalorder %s1976, 95
          %s1979 = scalar_select %p1978, %s1976, 95
          %p1980 = scmp.lt.s32.totalorder %s1977, 1
          %s1981 = scalar_select %p1980, %s1977, 1
          %s1982 = smul.addr %s1979, 2
          %s1983 = sadd.s32 %s1981, %s1982
          %s1984 = smul.addr %s1983, 8
          %s1985 = scalar_lea.vmem %s3, %s1984
        $region78: #{matmul_bias_relu.1} parent=73 // pred_fallthru
          _
      $region74: #{matmul_bias_relu.1} parent=5 // pred_fallthru
        _
    $region6: #{matmul_bias_relu.1} parent=1 // loop_footer
      %s13 = sadd.s32 1, %s9
    $region7: #{matmul_bias_relu.1} parent=1 // loop_footer_branch
      %8 = sbr.rel target = $region3
    $region8: #{matmul_bias_relu.1} parent=1 // loop_exit
      _

</llo_original>
